<compile_context>
chip_gen: v5e
topology: v5e:2x2
jax: 0.10.0
libtpu: 0.0.40
codegen_flags: <defaults>
</compile_context>

<pallas_src>
import numpy as np
import jax
import jax.numpy as jnp
from jax.experimental import pallas as pl
from jax.experimental.pallas import tpu as pltpu

B = 2
H, W = 3, 6
C0, C1, C2 = 2, 32, 64
R = B * H * W                 # 36 rows per feature map
FEAT = C2 * H * W             # 1152
N_ACTIONS = 18
N_HEAD = N_ACTIONS + 1        # actor(18) + critic(1) fused
NEG_SLOPE = 0.01              # nn.LeakyReLU default


# ---------------------------------------------------------------------------
# Static tap-validity masks (host-side, tiny): mask[r, ky*3+kx] == 1 iff the
# 3x3 tap (ky, kx) at output row r = (h*W+w)*B + b lands inside the image.
# ---------------------------------------------------------------------------
def _build_tap_masks() -> np.ndarray:
    m = np.zeros((R, 9), np.float32)
    for h in range(H):
        for w in range(W):
            for b in range(B):
                r = (h * W + w) * B + b
                for ky in range(3):
                    for kx in range(3):
                        if 0 <= h + ky - 1 < H and 0 <= w + kx - 1 < W:
                            m[r, ky * 3 + kx] = 1.0
    return m


_TAP_MASKS = _build_tap_masks()


# ---------------------------------------------------------------------------
# Fused kernel
# ---------------------------------------------------------------------------
def fused_kernel(x_ref, m_ref, w1_ref, b1_ref, w2_ref, b2_ref, wh_ref, bh_ref,
                 actor_ref, critic_ref):
    masks = m_ref[...]                       # (R, 9) f32 in {0, 1}
    x = x_ref[...]                           # (R, C0) f32

    def shifted_taps(v, fill):
        """9 spatially shifted copies of v; out-of-bounds positions -> fill."""
        cols = v.shape[1]
        out = []
        for ky in range(3):
            for kx in range(3):
                t = ky * 3 + kx
                s = ((ky - 1) * W + (kx - 1)) * B        # static row shift
                sh = s % R
                if sh == 0:
                    shifted = v
                else:                                     # shifted[r] = v[(r+s) % R]
                    shifted = jnp.concatenate([v[sh:, :], v[:sh, :]], axis=0)
                m = jnp.broadcast_to(masks[:, t:t + 1], (R, cols))
                out.append(jnp.where(m > 0.5, shifted, fill))
        return out

    def conv3x3(v, w_ref_, b_ref_):
        # im2col: ONE (R, 9*Cin) x (9*Cin, Cout) matmul instead of 9 tiny ones.
        cols = jnp.concatenate(shifted_taps(v, 0.0), axis=1)
        return jnp.dot(cols.astype(jnp.bfloat16), w_ref_[...],
                       preferred_element_type=jnp.float32) + b_ref_[...]

    def maxpool3x3(v):
        taps = shifted_taps(v, -jnp.inf)      # -inf padding, matching PyTorch
        out = taps[0]
        for t in taps[1:]:
            out = jnp.maximum(out, t)
        return out

    a1 = conv3x3(x, w1_ref, b1_ref)           # conv1: 2 -> 32, k3 s1 p1
    p1 = maxpool3x3(a1)                       # maxpool 3x3 s1 p1
    a2 = conv3x3(p1, w2_ref, b2_ref)          # conv2: 32 -> 64, k3 s1 p1
    p2 = maxpool3x3(a2)                       # maxpool 3x3 s1 p1
    feat = jnp.where(p2 > 0, p2, NEG_SLOPE * p2)          # LeakyReLU (f32)

    # Flatten: lanes ordered (h, w, c).  Head weights were repacked to this row
    # order at init time, so no transpose / HBM round-trip is needed here.
    common = jnp.concatenate(
        [feat[p * B:(p + 1) * B, :] for p in range(H * W)], axis=1)    # (B, 1152)

    logits = jnp.dot(common.astype(jnp.bfloat16), wh_ref[...],
                     preferred_element_type=jnp.float32) + bh_ref[...]  # (B, 19)
    actor_ref[...] = jnp.maximum(logits[:, :N_ACTIONS], 0.0)            # Linear + ReLU
    critic_ref[...] = logits[:, N_ACTIONS:]                             # Linear


# ---------------------------------------------------------------------------
# Wrapper
# ---------------------------------------------------------------------------
def _full_spec(shape):
    nd = len(shape)
    return pl.BlockSpec(shape, lambda i: (0,) * nd)


@jax.jit
def prediction_forward(x_nchw, params):
    w1, b1, w2, b2, wh, bh = params
    # NCHW -> rows (h*W+w)*B + b, lanes = input channels (tiny one-time layout glue).
    x_rows = jnp.transpose(x_nchw, (2, 3, 0, 1)).reshape(R, C0).astype(jnp.float32)
    masks = jnp.asarray(_TAP_MASKS)

    in_arrays = (x_rows, masks, w1, b1, w2, b2, wh, bh)
    actor, critic = pl.pallas_call(
        fused_kernel,
        out_shape=(jax.ShapeDtypeStruct((B, N_ACTIONS), jnp.float32),
                   jax.ShapeDtypeStruct((B, 1), jnp.float32)),
        grid=(1,),
        in_specs=[_full_spec(a.shape) for a in in_arrays],
        out_specs=(_full_spec((B, N_ACTIONS)), _full_spec((B, 1))),
        compiler_params=pltpu.CompilerParams(dimension_semantics=("arbitrary",)),
    )(*in_arrays)
    return actor, critic


# ---------------------------------------------------------------------------
# Parameters: PyTorch-shaped init + one-time host-side repacking
# ---------------------------------------------------------------------------
def init_torch_params(key):
    ks = jax.random.split(key, 8)
    return dict(
        conv1_w=jax.random.normal(ks[0], (C1, C0, 3, 3), jnp.float32) * 0.1,
        conv1_b=jax.random.normal(ks[1], (C1,), jnp.float32) * 0.1,
        conv2_w=jax.random.normal(ks[2], (C2, C1, 3, 3), jnp.float32) * 0.05,
        conv2_b=jax.random.normal(ks[3], (C2,), jnp.float32) * 0.05,
        actor_w=jax.random.normal(ks[4], (N_ACTIONS, FEAT), jnp.float32) * 0.02,
        actor_b=jax.random.normal(ks[5], (N_ACTIONS,), jnp.float32) * 0.02,
        critic_w=jax.random.normal(ks[6], (1, FEAT), jnp.float32) * 0.02,
        critic_b=jax.random.normal(ks[7], (1,), jnp.float32) * 0.02,
    )


def pack_params(p):
    """Repack PyTorch-shaped params into the kernel's layout."""
    # Conv weights (Cout, Cin, 3, 3) -> im2col rows (ky*3+kx)*Cin + cin; bf16 MXU operands.
    w1 = jnp.transpose(p["conv1_w"], (2, 3, 1, 0)).reshape(9 * C0, C1).astype(jnp.bfloat16)
    w2 = jnp.transpose(p["conv2_w"], (2, 3, 1, 0)).reshape(9 * C1, C2).astype(jnp.bfloat16)
    b1 = p["conv1_b"].reshape(1, C1)
    b2 = p["conv2_b"].reshape(1, C2)

    # Head weights (out, FEAT) with FEAT flattened (c, h, w) in PyTorch -> reorder rows
    # to the kernel's (h, w, c) lane order; fuse actor & critic into one matrix.
    def repack_head(w):
        return jnp.transpose(w.reshape(-1, C2, H, W), (2, 3, 1, 0)).reshape(FEAT, -1)

    wh = jnp.concatenate([repack_head(p["actor_w"]), repack_head(p["critic_w"])],
                         axis=1).astype(jnp.bfloat16)                       # (1152, 19)
    bh = jnp.concatenate([p["actor_b"], p["critic_b"]]).reshape(1, N_HEAD)   # (1, 19)
    return (w1, b1, w2, b2, wh, bh)


# ---------------------------------------------------------------------------
# Pure-JAX reference (f32, HIGHEST precision) for a numerical sanity check
# ---------------------------------------------------------------------------
def reference_forward(x, p):
    hi = jax.lax.Precision.HIGHEST

    def conv(v, w, b):
        out = jax.lax.conv_general_dilated(
            v, w, window_strides=(1, 1), padding=((1, 1), (1, 1)),
            dimension_numbers=("NCHW", "OIHW", "NCHW"), precision=hi)
        return out + b.reshape(1, -1, 1, 1)

    def maxpool(v):
        return jax.lax.reduce_window(
            v, -jnp.inf, jax.lax.max, (1, 1, 3, 3), (1, 1, 1, 1),
            ((0, 0), (0, 0), (1, 1), (1, 1)))

    h1 = maxpool(conv(x, p["conv1_w"], p["conv1_b"]))
    h2 = maxpool(conv(h1, p["conv2_w"], p["conv2_b"]))
    h2 = jnp.where(h2 > 0, h2, NEG_SLOPE * h2)
    common = h2.reshape(x.shape[0], -1)                      # Flatten (c, h, w)
    actor = jnp.maximum(jnp.dot(common, p["actor_w"].T, precision=hi) + p["actor_b"], 0.0)
    critic = jnp.dot(common, p["critic_w"].T, precision=hi) + p["critic_b"]
    return actor, critic


# TODO(synk): HuberLoss / Adam optimizer in __init__ are training-only and not part
# of the forward pass; intentionally not implemented.

if __name__ == "__main__":
    key = jax.random.PRNGKey(0)
    pkey, xkey = jax.random.split(key)
    torch_params = init_torch_params(pkey)
    params = pack_params(torch_params)

    x = jax.random.normal(xkey, (B, C0, H, W), jnp.float32)   # NCHW, like PyTorch

    actor, critic = prediction_forward(x, params)
    jax.block_until_ready((actor, critic))

    assert actor.shape == (B, N_ACTIONS) and critic.shape == (B, 1)
    assert bool(jnp.all(jnp.isfinite(actor))) and bool(jnp.all(jnp.isfinite(critic)))
    assert bool(jnp.all(actor >= 0.0))                        # ReLU on the actor head

    # Numerical check vs. pure-JAX reference (tolerance covers bf16 MXU operands).
    actor_ref, critic_ref = reference_forward(x, torch_params)
    np.testing.assert_allclose(np.asarray(actor), np.asarray(actor_ref),
                               rtol=5e-2, atol=5e-2)
    np.testing.assert_allclose(np.asarray(critic), np.asarray(critic_ref),
                               rtol=5e-2, atol=5e-2)

    print("KERNEL_OK")
</pallas_src>

<mosaic_0001>
module attributes {stable_mosaic.version = 11 : i64} {
  func.func @fused_kernel(%arg0: i32, %arg1: memref<36x2xf32, #tpu.memory_space<vmem>>, %arg2: memref<36x9xf32, #tpu.memory_space<vmem>>, %arg3: memref<18x32xbf16, #tpu.memory_space<vmem>>, %arg4: memref<1x32xf32, #tpu.memory_space<vmem>>, %arg5: memref<288x64xbf16, #tpu.memory_space<vmem>>, %arg6: memref<1x64xf32, #tpu.memory_space<vmem>>, %arg7: memref<1152x19xbf16, #tpu.memory_space<vmem>>, %arg8: memref<1x19xf32, #tpu.memory_space<vmem>>, %arg9: memref<2x18xf32, #tpu.memory_space<vmem>>, %arg10: memref<2x1xf32, #tpu.memory_space<vmem>>) attributes {dimension_semantics = [#tpu.dimension_semantics<arbitrary>], iteration_bounds = array<i64: 1>, scalar_prefetch = 0 : i64, scratch_operands = 0 : i64, tpu.core_type = #tpu.core_type<tc>, window_params = [{pipeline_mode = #tpu.pipeline_mode<synchronous>, transform_indices = @transform_0, window_bounds = array<i64: 36, 2>}, {pipeline_mode = #tpu.pipeline_mode<synchronous>, transform_indices = @transform_1, window_bounds = array<i64: 36, 9>}, {pipeline_mode = #tpu.pipeline_mode<synchronous>, transform_indices = @transform_2, window_bounds = array<i64: 18, 32>}, {pipeline_mode = #tpu.pipeline_mode<synchronous>, transform_indices = @transform_3, window_bounds = array<i64: 1, 32>}, {pipeline_mode = #tpu.pipeline_mode<synchronous>, transform_indices = @transform_4, window_bounds = array<i64: 288, 64>}, {pipeline_mode = #tpu.pipeline_mode<synchronous>, transform_indices = @transform_5, window_bounds = array<i64: 1, 64>}, {pipeline_mode = #tpu.pipeline_mode<synchronous>, transform_indices = @transform_6, window_bounds = array<i64: 1152, 19>}, {pipeline_mode = #tpu.pipeline_mode<synchronous>, transform_indices = @transform_7, window_bounds = array<i64: 1, 19>}, {pipeline_mode = #tpu.pipeline_mode<synchronous>, transform_indices = @transform_8, window_bounds = array<i64: 2, 18>}, {pipeline_mode = #tpu.pipeline_mode<synchronous>, transform_indices = @transform_9, window_bounds = array<i64: 2, 1>}]} {
    %c0 = arith.constant 0 : index
    %c0_0 = arith.constant 0 : index
    %0 = vector.load %arg2[%c0, %c0_0] : memref<36x9xf32, #tpu.memory_space<vmem>>, vector<36x9xf32>
    %c0_1 = arith.constant 0 : index
    %c0_2 = arith.constant 0 : index
    %1 = vector.load %arg1[%c0_1, %c0_2] : memref<36x2xf32, #tpu.memory_space<vmem>>, vector<36x2xf32>
    %2 = vector.extract_strided_slice %1 {offsets = [22, 0], sizes = [14, 2], strides = [1, 1]} : vector<36x2xf32> to vector<14x2xf32>
    %3 = vector.extract_strided_slice %1 {offsets = [0, 0], sizes = [22, 2], strides = [1, 1]} : vector<36x2xf32> to vector<22x2xf32>
    %4 = tpu.concatenate %2, %3 in 0 : vector<14x2xf32>, vector<22x2xf32> -> vector<36x2xf32>
    %5 = vector.extract_strided_slice %0 {offsets = [0, 0], sizes = [36, 1], strides = [1, 1]} : vector<36x9xf32> to vector<36x1xf32>
    %6 = vector.shape_cast %5 : vector<36x1xf32> to vector<36x1xf32>
    %7 = vector.broadcast %6 : vector<36x1xf32> to vector<36x2xf32>
    %cst = arith.constant 5.000000e-01 : f32
    %8 = vector.broadcast %cst : f32 to vector<36x2xf32>
    %9 = arith.cmpf ogt, %7, %8 : vector<36x2xf32>
    %cst_3 = arith.constant 0.000000e+00 : f32
    %10 = vector.broadcast %cst_3 : f32 to vector<36x2xf32>
    %11 = arith.select %9, %4, %10 : vector<36x2xi1>, vector<36x2xf32>
    %12 = vector.extract_strided_slice %1 {offsets = [24, 0], sizes = [12, 2], strides = [1, 1]} : vector<36x2xf32> to vector<12x2xf32>
    %13 = vector.extract_strided_slice %1 {offsets = [0, 0], sizes = [24, 2], strides = [1, 1]} : vector<36x2xf32> to vector<24x2xf32>
    %14 = tpu.concatenate %12, %13 in 0 : vector<12x2xf32>, vector<24x2xf32> -> vector<36x2xf32>
    %15 = vector.extract_strided_slice %0 {offsets = [0, 1], sizes = [36, 1], strides = [1, 1]} : vector<36x9xf32> to vector<36x1xf32>
    %16 = vector.shape_cast %15 : vector<36x1xf32> to vector<36x1xf32>
    %17 = vector.broadcast %16 : vector<36x1xf32> to vector<36x2xf32>
    %cst_4 = arith.constant 5.000000e-01 : f32
    %18 = vector.broadcast %cst_4 : f32 to vector<36x2xf32>
    %19 = arith.cmpf ogt, %17, %18 : vector<36x2xf32>
    %cst_5 = arith.constant 0.000000e+00 : f32
    %20 = vector.broadcast %cst_5 : f32 to vector<36x2xf32>
    %21 = arith.select %19, %14, %20 : vector<36x2xi1>, vector<36x2xf32>
    %22 = vector.extract_strided_slice %1 {offsets = [26, 0], sizes = [10, 2], strides = [1, 1]} : vector<36x2xf32> to vector<10x2xf32>
    %23 = vector.extract_strided_slice %1 {offsets = [0, 0], sizes = [26, 2], strides = [1, 1]} : vector<36x2xf32> to vector<26x2xf32>
    %24 = tpu.concatenate %22, %23 in 0 : vector<10x2xf32>, vector<26x2xf32> -> vector<36x2xf32>
    %25 = vector.extract_strided_slice %0 {offsets = [0, 2], sizes = [36, 1], strides = [1, 1]} : vector<36x9xf32> to vector<36x1xf32>
    %26 = vector.shape_cast %25 : vector<36x1xf32> to vector<36x1xf32>
    %27 = vector.broadcast %26 : vector<36x1xf32> to vector<36x2xf32>
    %cst_6 = arith.constant 5.000000e-01 : f32
    %28 = vector.broadcast %cst_6 : f32 to vector<36x2xf32>
    %29 = arith.cmpf ogt, %27, %28 : vector<36x2xf32>
    %cst_7 = arith.constant 0.000000e+00 : f32
    %30 = vector.broadcast %cst_7 : f32 to vector<36x2xf32>
    %31 = arith.select %29, %24, %30 : vector<36x2xi1>, vector<36x2xf32>
    %32 = vector.extract_strided_slice %1 {offsets = [34, 0], sizes = [2, 2], strides = [1, 1]} : vector<36x2xf32> to vector<2x2xf32>
    %33 = vector.extract_strided_slice %1 {offsets = [0, 0], sizes = [34, 2], strides = [1, 1]} : vector<36x2xf32> to vector<34x2xf32>
    %34 = tpu.concatenate %32, %33 in 0 : vector<2x2xf32>, vector<34x2xf32> -> vector<36x2xf32>
    %35 = vector.extract_strided_slice %0 {offsets = [0, 3], sizes = [36, 1], strides = [1, 1]} : vector<36x9xf32> to vector<36x1xf32>
    %36 = vector.shape_cast %35 : vector<36x1xf32> to vector<36x1xf32>
    %37 = vector.broadcast %36 : vector<36x1xf32> to vector<36x2xf32>
    %cst_8 = arith.constant 5.000000e-01 : f32
    %38 = vector.broadcast %cst_8 : f32 to vector<36x2xf32>
    %39 = arith.cmpf ogt, %37, %38 : vector<36x2xf32>
    %cst_9 = arith.constant 0.000000e+00 : f32
    %40 = vector.broadcast %cst_9 : f32 to vector<36x2xf32>
    %41 = arith.select %39, %34, %40 : vector<36x2xi1>, vector<36x2xf32>
    %42 = vector.extract_strided_slice %0 {offsets = [0, 4], sizes = [36, 1], strides = [1, 1]} : vector<36x9xf32> to vector<36x1xf32>
    %43 = vector.shape_cast %42 : vector<36x1xf32> to vector<36x1xf32>
    %44 = vector.broadcast %43 : vector<36x1xf32> to vector<36x2xf32>
    %cst_10 = arith.constant 5.000000e-01 : f32
    %45 = vector.broadcast %cst_10 : f32 to vector<36x2xf32>
    %46 = arith.cmpf ogt, %44, %45 : vector<36x2xf32>
    %cst_11 = arith.constant 0.000000e+00 : f32
    %47 = vector.broadcast %cst_11 : f32 to vector<36x2xf32>
    %48 = arith.select %46, %1, %47 : vector<36x2xi1>, vector<36x2xf32>
    %49 = vector.extract_strided_slice %1 {offsets = [2, 0], sizes = [34, 2], strides = [1, 1]} : vector<36x2xf32> to vector<34x2xf32>
    %50 = vector.extract_strided_slice %1 {offsets = [0, 0], sizes = [2, 2], strides = [1, 1]} : vector<36x2xf32> to vector<2x2xf32>
    %51 = tpu.concatenate %49, %50 in 0 : vector<34x2xf32>, vector<2x2xf32> -> vector<36x2xf32>
    %52 = vector.extract_strided_slice %0 {offsets = [0, 5], sizes = [36, 1], strides = [1, 1]} : vector<36x9xf32> to vector<36x1xf32>
    %53 = vector.shape_cast %52 : vector<36x1xf32> to vector<36x1xf32>
    %54 = vector.broadcast %53 : vector<36x1xf32> to vector<36x2xf32>
    %cst_12 = arith.constant 5.000000e-01 : f32
    %55 = vector.broadcast %cst_12 : f32 to vector<36x2xf32>
    %56 = arith.cmpf ogt, %54, %55 : vector<36x2xf32>
    %cst_13 = arith.constant 0.000000e+00 : f32
    %57 = vector.broadcast %cst_13 : f32 to vector<36x2xf32>
    %58 = arith.select %56, %51, %57 : vector<36x2xi1>, vector<36x2xf32>
    %59 = vector.extract_strided_slice %1 {offsets = [10, 0], sizes = [26, 2], strides = [1, 1]} : vector<36x2xf32> to vector<26x2xf32>
    %60 = vector.extract_strided_slice %1 {offsets = [0, 0], sizes = [10, 2], strides = [1, 1]} : vector<36x2xf32> to vector<10x2xf32>
    %61 = tpu.concatenate %59, %60 in 0 : vector<26x2xf32>, vector<10x2xf32> -> vector<36x2xf32>
    %62 = vector.extract_strided_slice %0 {offsets = [0, 6], sizes = [36, 1], strides = [1, 1]} : vector<36x9xf32> to vector<36x1xf32>
    %63 = vector.shape_cast %62 : vector<36x1xf32> to vector<36x1xf32>
    %64 = vector.broadcast %63 : vector<36x1xf32> to vector<36x2xf32>
    %cst_14 = arith.constant 5.000000e-01 : f32
    %65 = vector.broadcast %cst_14 : f32 to vector<36x2xf32>
    %66 = arith.cmpf ogt, %64, %65 : vector<36x2xf32>
    %cst_15 = arith.constant 0.000000e+00 : f32
    %67 = vector.broadcast %cst_15 : f32 to vector<36x2xf32>
    %68 = arith.select %66, %61, %67 : vector<36x2xi1>, vector<36x2xf32>
    %69 = vector.extract_strided_slice %1 {offsets = [12, 0], sizes = [24, 2], strides = [1, 1]} : vector<36x2xf32> to vector<24x2xf32>
    %70 = vector.extract_strided_slice %1 {offsets = [0, 0], sizes = [12, 2], strides = [1, 1]} : vector<36x2xf32> to vector<12x2xf32>
    %71 = tpu.concatenate %69, %70 in 0 : vector<24x2xf32>, vector<12x2xf32> -> vector<36x2xf32>
    %72 = vector.extract_strided_slice %0 {offsets = [0, 7], sizes = [36, 1], strides = [1, 1]} : vector<36x9xf32> to vector<36x1xf32>
    %73 = vector.shape_cast %72 : vector<36x1xf32> to vector<36x1xf32>
    %74 = vector.broadcast %73 : vector<36x1xf32> to vector<36x2xf32>
    %cst_16 = arith.constant 5.000000e-01 : f32
    %75 = vector.broadcast %cst_16 : f32 to vector<36x2xf32>
    %76 = arith.cmpf ogt, %74, %75 : vector<36x2xf32>
    %cst_17 = arith.constant 0.000000e+00 : f32
    %77 = vector.broadcast %cst_17 : f32 to vector<36x2xf32>
    %78 = arith.select %76, %71, %77 : vector<36x2xi1>, vector<36x2xf32>
    %79 = vector.extract_strided_slice %1 {offsets = [14, 0], sizes = [22, 2], strides = [1, 1]} : vector<36x2xf32> to vector<22x2xf32>
    %80 = vector.extract_strided_slice %1 {offsets = [0, 0], sizes = [14, 2], strides = [1, 1]} : vector<36x2xf32> to vector<14x2xf32>
    %81 = tpu.concatenate %79, %80 in 0 : vector<22x2xf32>, vector<14x2xf32> -> vector<36x2xf32>
    %82 = vector.extract_strided_slice %0 {offsets = [0, 8], sizes = [36, 1], strides = [1, 1]} : vector<36x9xf32> to vector<36x1xf32>
    %83 = vector.shape_cast %82 : vector<36x1xf32> to vector<36x1xf32>
    %84 = vector.broadcast %83 : vector<36x1xf32> to vector<36x2xf32>
    %cst_18 = arith.constant 5.000000e-01 : f32
    %85 = vector.broadcast %cst_18 : f32 to vector<36x2xf32>
    %86 = arith.cmpf ogt, %84, %85 : vector<36x2xf32>
    %cst_19 = arith.constant 0.000000e+00 : f32
    %87 = vector.broadcast %cst_19 : f32 to vector<36x2xf32>
    %88 = arith.select %86, %81, %87 : vector<36x2xi1>, vector<36x2xf32>
    %89 = tpu.concatenate %11, %21, %31, %41, %48, %58, %68, %78, %88 in 1 : vector<36x2xf32>, vector<36x2xf32>, vector<36x2xf32>, vector<36x2xf32>, vector<36x2xf32>, vector<36x2xf32>, vector<36x2xf32>, vector<36x2xf32>, vector<36x2xf32> -> vector<36x18xf32>
    %90 = arith.truncf %89 : vector<36x18xf32> to vector<36x18xbf16>
    %c0_20 = arith.constant 0 : index
    %c0_21 = arith.constant 0 : index
    %91 = vector.load %arg3[%c0_20, %c0_21] : memref<18x32xbf16, #tpu.memory_space<vmem>>, vector<18x32xbf16>
    %cst_22 = arith.constant dense<0.000000e+00> : vector<36x32xf32>
    %92 = tpu.matmul %90, %91, %cst_22 {dimension_numbers = #tpu.dot_dimension_numbers<[1], [0], [0], [1], [0, 0, 1, 1], [], []>} : vector<36x18xbf16>, vector<18x32xbf16>, vector<36x32xf32> -> vector<36x32xf32>
    %c0_23 = arith.constant 0 : index
    %c0_24 = arith.constant 0 : index
    %93 = vector.load %arg4[%c0_23, %c0_24] : memref<1x32xf32, #tpu.memory_space<vmem>>, vector<1x32xf32>
    %94 = vector.broadcast %93 : vector<1x32xf32> to vector<36x32xf32>
    %95 = arith.addf %92, %94 : vector<36x32xf32>
    %96 = vector.extract_strided_slice %95 {offsets = [22, 0], sizes = [14, 32], strides = [1, 1]} : vector<36x32xf32> to vector<14x32xf32>
    %97 = vector.extract_strided_slice %95 {offsets = [0, 0], sizes = [22, 32], strides = [1, 1]} : vector<36x32xf32> to vector<22x32xf32>
    %98 = tpu.concatenate %96, %97 in 0 : vector<14x32xf32>, vector<22x32xf32> -> vector<36x32xf32>
    %99 = vector.extract_strided_slice %0 {offsets = [0, 0], sizes = [36, 1], strides = [1, 1]} : vector<36x9xf32> to vector<36x1xf32>
    %100 = vector.shape_cast %99 : vector<36x1xf32> to vector<36x1xf32>
    %101 = vector.broadcast %100 : vector<36x1xf32> to vector<36x32xf32>
    %cst_25 = arith.constant 5.000000e-01 : f32
    %102 = vector.broadcast %cst_25 : f32 to vector<36x32xf32>
    %103 = arith.cmpf ogt, %101, %102 : vector<36x32xf32>
    %cst_26 = arith.constant 0xFF800000 : f32
    %104 = vector.broadcast %cst_26 : f32 to vector<36x32xf32>
    %105 = arith.select %103, %98, %104 : vector<36x32xi1>, vector<36x32xf32>
    %106 = vector.extract_strided_slice %95 {offsets = [24, 0], sizes = [12, 32], strides = [1, 1]} : vector<36x32xf32> to vector<12x32xf32>
    %107 = vector.extract_strided_slice %95 {offsets = [0, 0], sizes = [24, 32], strides = [1, 1]} : vector<36x32xf32> to vector<24x32xf32>
    %108 = tpu.concatenate %106, %107 in 0 : vector<12x32xf32>, vector<24x32xf32> -> vector<36x32xf32>
    %109 = vector.extract_strided_slice %0 {offsets = [0, 1], sizes = [36, 1], strides = [1, 1]} : vector<36x9xf32> to vector<36x1xf32>
    %110 = vector.shape_cast %109 : vector<36x1xf32> to vector<36x1xf32>
    %111 = vector.broadcast %110 : vector<36x1xf32> to vector<36x32xf32>
    %cst_27 = arith.constant 5.000000e-01 : f32
    %112 = vector.broadcast %cst_27 : f32 to vector<36x32xf32>
    %113 = arith.cmpf ogt, %111, %112 : vector<36x32xf32>
    %cst_28 = arith.constant 0xFF800000 : f32
    %114 = vector.broadcast %cst_28 : f32 to vector<36x32xf32>
    %115 = arith.select %113, %108, %114 : vector<36x32xi1>, vector<36x32xf32>
    %116 = vector.extract_strided_slice %95 {offsets = [26, 0], sizes = [10, 32], strides = [1, 1]} : vector<36x32xf32> to vector<10x32xf32>
    %117 = vector.extract_strided_slice %95 {offsets = [0, 0], sizes = [26, 32], strides = [1, 1]} : vector<36x32xf32> to vector<26x32xf32>
    %118 = tpu.concatenate %116, %117 in 0 : vector<10x32xf32>, vector<26x32xf32> -> vector<36x32xf32>
    %119 = vector.extract_strided_slice %0 {offsets = [0, 2], sizes = [36, 1], strides = [1, 1]} : vector<36x9xf32> to vector<36x1xf32>
    %120 = vector.shape_cast %119 : vector<36x1xf32> to vector<36x1xf32>
    %121 = vector.broadcast %120 : vector<36x1xf32> to vector<36x32xf32>
    %cst_29 = arith.constant 5.000000e-01 : f32
    %122 = vector.broadcast %cst_29 : f32 to vector<36x32xf32>
    %123 = arith.cmpf ogt, %121, %122 : vector<36x32xf32>
    %cst_30 = arith.constant 0xFF800000 : f32
    %124 = vector.broadcast %cst_30 : f32 to vector<36x32xf32>
    %125 = arith.select %123, %118, %124 : vector<36x32xi1>, vector<36x32xf32>
    %126 = vector.extract_strided_slice %95 {offsets = [34, 0], sizes = [2, 32], strides = [1, 1]} : vector<36x32xf32> to vector<2x32xf32>
    %127 = vector.extract_strided_slice %95 {offsets = [0, 0], sizes = [34, 32], strides = [1, 1]} : vector<36x32xf32> to vector<34x32xf32>
    %128 = tpu.concatenate %126, %127 in 0 : vector<2x32xf32>, vector<34x32xf32> -> vector<36x32xf32>
    %129 = vector.extract_strided_slice %0 {offsets = [0, 3], sizes = [36, 1], strides = [1, 1]} : vector<36x9xf32> to vector<36x1xf32>
    %130 = vector.shape_cast %129 : vector<36x1xf32> to vector<36x1xf32>
    %131 = vector.broadcast %130 : vector<36x1xf32> to vector<36x32xf32>
    %cst_31 = arith.constant 5.000000e-01 : f32
    %132 = vector.broadcast %cst_31 : f32 to vector<36x32xf32>
    %133 = arith.cmpf ogt, %131, %132 : vector<36x32xf32>
    %cst_32 = arith.constant 0xFF800000 : f32
    %134 = vector.broadcast %cst_32 : f32 to vector<36x32xf32>
    %135 = arith.select %133, %128, %134 : vector<36x32xi1>, vector<36x32xf32>
    %136 = vector.extract_strided_slice %0 {offsets = [0, 4], sizes = [36, 1], strides = [1, 1]} : vector<36x9xf32> to vector<36x1xf32>
    %137 = vector.shape_cast %136 : vector<36x1xf32> to vector<36x1xf32>
    %138 = vector.broadcast %137 : vector<36x1xf32> to vector<36x32xf32>
    %cst_33 = arith.constant 5.000000e-01 : f32
    %139 = vector.broadcast %cst_33 : f32 to vector<36x32xf32>
    %140 = arith.cmpf ogt, %138, %139 : vector<36x32xf32>
    %cst_34 = arith.constant 0xFF800000 : f32
    %141 = vector.broadcast %cst_34 : f32 to vector<36x32xf32>
    %142 = arith.select %140, %95, %141 : vector<36x32xi1>, vector<36x32xf32>
    %143 = vector.extract_strided_slice %95 {offsets = [2, 0], sizes = [34, 32], strides = [1, 1]} : vector<36x32xf32> to vector<34x32xf32>
    %144 = vector.extract_strided_slice %95 {offsets = [0, 0], sizes = [2, 32], strides = [1, 1]} : vector<36x32xf32> to vector<2x32xf32>
    %145 = tpu.concatenate %143, %144 in 0 : vector<34x32xf32>, vector<2x32xf32> -> vector<36x32xf32>
    %146 = vector.extract_strided_slice %0 {offsets = [0, 5], sizes = [36, 1], strides = [1, 1]} : vector<36x9xf32> to vector<36x1xf32>
    %147 = vector.shape_cast %146 : vector<36x1xf32> to vector<36x1xf32>
    %148 = vector.broadcast %147 : vector<36x1xf32> to vector<36x32xf32>
    %cst_35 = arith.constant 5.000000e-01 : f32
    %149 = vector.broadcast %cst_35 : f32 to vector<36x32xf32>
    %150 = arith.cmpf ogt, %148, %149 : vector<36x32xf32>
    %cst_36 = arith.constant 0xFF800000 : f32
    %151 = vector.broadcast %cst_36 : f32 to vector<36x32xf32>
    %152 = arith.select %150, %145, %151 : vector<36x32xi1>, vector<36x32xf32>
    %153 = vector.extract_strided_slice %95 {offsets = [10, 0], sizes = [26, 32], strides = [1, 1]} : vector<36x32xf32> to vector<26x32xf32>
    %154 = vector.extract_strided_slice %95 {offsets = [0, 0], sizes = [10, 32], strides = [1, 1]} : vector<36x32xf32> to vector<10x32xf32>
    %155 = tpu.concatenate %153, %154 in 0 : vector<26x32xf32>, vector<10x32xf32> -> vector<36x32xf32>
    %156 = vector.extract_strided_slice %0 {offsets = [0, 6], sizes = [36, 1], strides = [1, 1]} : vector<36x9xf32> to vector<36x1xf32>
    %157 = vector.shape_cast %156 : vector<36x1xf32> to vector<36x1xf32>
    %158 = vector.broadcast %157 : vector<36x1xf32> to vector<36x32xf32>
    %cst_37 = arith.constant 5.000000e-01 : f32
    %159 = vector.broadcast %cst_37 : f32 to vector<36x32xf32>
    %160 = arith.cmpf ogt, %158, %159 : vector<36x32xf32>
    %cst_38 = arith.constant 0xFF800000 : f32
    %161 = vector.broadcast %cst_38 : f32 to vector<36x32xf32>
    %162 = arith.select %160, %155, %161 : vector<36x32xi1>, vector<36x32xf32>
    %163 = vector.extract_strided_slice %95 {offsets = [12, 0], sizes = [24, 32], strides = [1, 1]} : vector<36x32xf32> to vector<24x32xf32>
    %164 = vector.extract_strided_slice %95 {offsets = [0, 0], sizes = [12, 32], strides = [1, 1]} : vector<36x32xf32> to vector<12x32xf32>
    %165 = tpu.concatenate %163, %164 in 0 : vector<24x32xf32>, vector<12x32xf32> -> vector<36x32xf32>
    %166 = vector.extract_strided_slice %0 {offsets = [0, 7], sizes = [36, 1], strides = [1, 1]} : vector<36x9xf32> to vector<36x1xf32>
    %167 = vector.shape_cast %166 : vector<36x1xf32> to vector<36x1xf32>
    %168 = vector.broadcast %167 : vector<36x1xf32> to vector<36x32xf32>
    %cst_39 = arith.constant 5.000000e-01 : f32
    %169 = vector.broadcast %cst_39 : f32 to vector<36x32xf32>
    %170 = arith.cmpf ogt, %168, %169 : vector<36x32xf32>
    %cst_40 = arith.constant 0xFF800000 : f32
    %171 = vector.broadcast %cst_40 : f32 to vector<36x32xf32>
    %172 = arith.select %170, %165, %171 : vector<36x32xi1>, vector<36x32xf32>
    %173 = vector.extract_strided_slice %95 {offsets = [14, 0], sizes = [22, 32], strides = [1, 1]} : vector<36x32xf32> to vector<22x32xf32>
    %174 = vector.extract_strided_slice %95 {offsets = [0, 0], sizes = [14, 32], strides = [1, 1]} : vector<36x32xf32> to vector<14x32xf32>
    %175 = tpu.concatenate %173, %174 in 0 : vector<22x32xf32>, vector<14x32xf32> -> vector<36x32xf32>
    %176 = vector.extract_strided_slice %0 {offsets = [0, 8], sizes = [36, 1], strides = [1, 1]} : vector<36x9xf32> to vector<36x1xf32>
    %177 = vector.shape_cast %176 : vector<36x1xf32> to vector<36x1xf32>
    %178 = vector.broadcast %177 : vector<36x1xf32> to vector<36x32xf32>
    %cst_41 = arith.constant 5.000000e-01 : f32
    %179 = vector.broadcast %cst_41 : f32 to vector<36x32xf32>
    %180 = arith.cmpf ogt, %178, %179 : vector<36x32xf32>
    %cst_42 = arith.constant 0xFF800000 : f32
    %181 = vector.broadcast %cst_42 : f32 to vector<36x32xf32>
    %182 = arith.select %180, %175, %181 : vector<36x32xi1>, vector<36x32xf32>
    %183 = arith.maximumf %105, %115 : vector<36x32xf32>
    %184 = arith.maximumf %183, %125 : vector<36x32xf32>
    %185 = arith.maximumf %184, %135 : vector<36x32xf32>
    %186 = arith.maximumf %185, %142 : vector<36x32xf32>
    %187 = arith.maximumf %186, %152 : vector<36x32xf32>
    %188 = arith.maximumf %187, %162 : vector<36x32xf32>
    %189 = arith.maximumf %188, %172 : vector<36x32xf32>
    %190 = arith.maximumf %189, %182 : vector<36x32xf32>
    %191 = vector.extract_strided_slice %190 {offsets = [22, 0], sizes = [14, 32], strides = [1, 1]} : vector<36x32xf32> to vector<14x32xf32>
    %192 = vector.extract_strided_slice %190 {offsets = [0, 0], sizes = [22, 32], strides = [1, 1]} : vector<36x32xf32> to vector<22x32xf32>
    %193 = tpu.concatenate %191, %192 in 0 : vector<14x32xf32>, vector<22x32xf32> -> vector<36x32xf32>
    %194 = vector.extract_strided_slice %0 {offsets = [0, 0], sizes = [36, 1], strides = [1, 1]} : vector<36x9xf32> to vector<36x1xf32>
    %195 = vector.shape_cast %194 : vector<36x1xf32> to vector<36x1xf32>
    %196 = vector.broadcast %195 : vector<36x1xf32> to vector<36x32xf32>
    %cst_43 = arith.constant 5.000000e-01 : f32
    %197 = vector.broadcast %cst_43 : f32 to vector<36x32xf32>
    %198 = arith.cmpf ogt, %196, %197 : vector<36x32xf32>
    %cst_44 = arith.constant 0.000000e+00 : f32
    %199 = vector.broadcast %cst_44 : f32 to vector<36x32xf32>
    %200 = arith.select %198, %193, %199 : vector<36x32xi1>, vector<36x32xf32>
    %201 = vector.extract_strided_slice %190 {offsets = [24, 0], sizes = [12, 32], strides = [1, 1]} : vector<36x32xf32> to vector<12x32xf32>
    %202 = vector.extract_strided_slice %190 {offsets = [0, 0], sizes = [24, 32], strides = [1, 1]} : vector<36x32xf32> to vector<24x32xf32>
    %203 = tpu.concatenate %201, %202 in 0 : vector<12x32xf32>, vector<24x32xf32> -> vector<36x32xf32>
    %204 = vector.extract_strided_slice %0 {offsets = [0, 1], sizes = [36, 1], strides = [1, 1]} : vector<36x9xf32> to vector<36x1xf32>
    %205 = vector.shape_cast %204 : vector<36x1xf32> to vector<36x1xf32>
    %206 = vector.broadcast %205 : vector<36x1xf32> to vector<36x32xf32>
    %cst_45 = arith.constant 5.000000e-01 : f32
    %207 = vector.broadcast %cst_45 : f32 to vector<36x32xf32>
    %208 = arith.cmpf ogt, %206, %207 : vector<36x32xf32>
    %cst_46 = arith.constant 0.000000e+00 : f32
    %209 = vector.broadcast %cst_46 : f32 to vector<36x32xf32>
    %210 = arith.select %208, %203, %209 : vector<36x32xi1>, vector<36x32xf32>
    %211 = vector.extract_strided_slice %190 {offsets = [26, 0], sizes = [10, 32], strides = [1, 1]} : vector<36x32xf32> to vector<10x32xf32>
    %212 = vector.extract_strided_slice %190 {offsets = [0, 0], sizes = [26, 32], strides = [1, 1]} : vector<36x32xf32> to vector<26x32xf32>
    %213 = tpu.concatenate %211, %212 in 0 : vector<10x32xf32>, vector<26x32xf32> -> vector<36x32xf32>
    %214 = vector.extract_strided_slice %0 {offsets = [0, 2], sizes = [36, 1], strides = [1, 1]} : vector<36x9xf32> to vector<36x1xf32>
    %215 = vector.shape_cast %214 : vector<36x1xf32> to vector<36x1xf32>
    %216 = vector.broadcast %215 : vector<36x1xf32> to vector<36x32xf32>
    %cst_47 = arith.constant 5.000000e-01 : f32
    %217 = vector.broadcast %cst_47 : f32 to vector<36x32xf32>
    %218 = arith.cmpf ogt, %216, %217 : vector<36x32xf32>
    %cst_48 = arith.constant 0.000000e+00 : f32
    %219 = vector.broadcast %cst_48 : f32 to vector<36x32xf32>
    %220 = arith.select %218, %213, %219 : vector<36x32xi1>, vector<36x32xf32>
    %221 = vector.extract_strided_slice %190 {offsets = [34, 0], sizes = [2, 32], strides = [1, 1]} : vector<36x32xf32> to vector<2x32xf32>
    %222 = vector.extract_strided_slice %190 {offsets = [0, 0], sizes = [34, 32], strides = [1, 1]} : vector<36x32xf32> to vector<34x32xf32>
    %223 = tpu.concatenate %221, %222 in 0 : vector<2x32xf32>, vector<34x32xf32> -> vector<36x32xf32>
    %224 = vector.extract_strided_slice %0 {offsets = [0, 3], sizes = [36, 1], strides = [1, 1]} : vector<36x9xf32> to vector<36x1xf32>
    %225 = vector.shape_cast %224 : vector<36x1xf32> to vector<36x1xf32>
    %226 = vector.broadcast %225 : vector<36x1xf32> to vector<36x32xf32>
    %cst_49 = arith.constant 5.000000e-01 : f32
    %227 = vector.broadcast %cst_49 : f32 to vector<36x32xf32>
    %228 = arith.cmpf ogt, %226, %227 : vector<36x32xf32>
    %cst_50 = arith.constant 0.000000e+00 : f32
    %229 = vector.broadcast %cst_50 : f32 to vector<36x32xf32>
    %230 = arith.select %228, %223, %229 : vector<36x32xi1>, vector<36x32xf32>
    %231 = vector.extract_strided_slice %0 {offsets = [0, 4], sizes = [36, 1], strides = [1, 1]} : vector<36x9xf32> to vector<36x1xf32>
    %232 = vector.shape_cast %231 : vector<36x1xf32> to vector<36x1xf32>
    %233 = vector.broadcast %232 : vector<36x1xf32> to vector<36x32xf32>
    %cst_51 = arith.constant 5.000000e-01 : f32
    %234 = vector.broadcast %cst_51 : f32 to vector<36x32xf32>
    %235 = arith.cmpf ogt, %233, %234 : vector<36x32xf32>
    %cst_52 = arith.constant 0.000000e+00 : f32
    %236 = vector.broadcast %cst_52 : f32 to vector<36x32xf32>
    %237 = arith.select %235, %190, %236 : vector<36x32xi1>, vector<36x32xf32>
    %238 = vector.extract_strided_slice %190 {offsets = [2, 0], sizes = [34, 32], strides = [1, 1]} : vector<36x32xf32> to vector<34x32xf32>
    %239 = vector.extract_strided_slice %190 {offsets = [0, 0], sizes = [2, 32], strides = [1, 1]} : vector<36x32xf32> to vector<2x32xf32>
    %240 = tpu.concatenate %238, %239 in 0 : vector<34x32xf32>, vector<2x32xf32> -> vector<36x32xf32>
    %241 = vector.extract_strided_slice %0 {offsets = [0, 5], sizes = [36, 1], strides = [1, 1]} : vector<36x9xf32> to vector<36x1xf32>
    %242 = vector.shape_cast %241 : vector<36x1xf32> to vector<36x1xf32>
    %243 = vector.broadcast %242 : vector<36x1xf32> to vector<36x32xf32>
    %cst_53 = arith.constant 5.000000e-01 : f32
    %244 = vector.broadcast %cst_53 : f32 to vector<36x32xf32>
    %245 = arith.cmpf ogt, %243, %244 : vector<36x32xf32>
    %cst_54 = arith.constant 0.000000e+00 : f32
    %246 = vector.broadcast %cst_54 : f32 to vector<36x32xf32>
    %247 = arith.select %245, %240, %246 : vector<36x32xi1>, vector<36x32xf32>
    %248 = vector.extract_strided_slice %190 {offsets = [10, 0], sizes = [26, 32], strides = [1, 1]} : vector<36x32xf32> to vector<26x32xf32>
    %249 = vector.extract_strided_slice %190 {offsets = [0, 0], sizes = [10, 32], strides = [1, 1]} : vector<36x32xf32> to vector<10x32xf32>
    %250 = tpu.concatenate %248, %249 in 0 : vector<26x32xf32>, vector<10x32xf32> -> vector<36x32xf32>
    %251 = vector.extract_strided_slice %0 {offsets = [0, 6], sizes = [36, 1], strides = [1, 1]} : vector<36x9xf32> to vector<36x1xf32>
    %252 = vector.shape_cast %251 : vector<36x1xf32> to vector<36x1xf32>
    %253 = vector.broadcast %252 : vector<36x1xf32> to vector<36x32xf32>
    %cst_55 = arith.constant 5.000000e-01 : f32
    %254 = vector.broadcast %cst_55 : f32 to vector<36x32xf32>
    %255 = arith.cmpf ogt, %253, %254 : vector<36x32xf32>
    %cst_56 = arith.constant 0.000000e+00 : f32
    %256 = vector.broadcast %cst_56 : f32 to vector<36x32xf32>
    %257 = arith.select %255, %250, %256 : vector<36x32xi1>, vector<36x32xf32>
    %258 = vector.extract_strided_slice %190 {offsets = [12, 0], sizes = [24, 32], strides = [1, 1]} : vector<36x32xf32> to vector<24x32xf32>
    %259 = vector.extract_strided_slice %190 {offsets = [0, 0], sizes = [12, 32], strides = [1, 1]} : vector<36x32xf32> to vector<12x32xf32>
    %260 = tpu.concatenate %258, %259 in 0 : vector<24x32xf32>, vector<12x32xf32> -> vector<36x32xf32>
    %261 = vector.extract_strided_slice %0 {offsets = [0, 7], sizes = [36, 1], strides = [1, 1]} : vector<36x9xf32> to vector<36x1xf32>
    %262 = vector.shape_cast %261 : vector<36x1xf32> to vector<36x1xf32>
    %263 = vector.broadcast %262 : vector<36x1xf32> to vector<36x32xf32>
    %cst_57 = arith.constant 5.000000e-01 : f32
    %264 = vector.broadcast %cst_57 : f32 to vector<36x32xf32>
    %265 = arith.cmpf ogt, %263, %264 : vector<36x32xf32>
    %cst_58 = arith.constant 0.000000e+00 : f32
    %266 = vector.broadcast %cst_58 : f32 to vector<36x32xf32>
    %267 = arith.select %265, %260, %266 : vector<36x32xi1>, vector<36x32xf32>
    %268 = vector.extract_strided_slice %190 {offsets = [14, 0], sizes = [22, 32], strides = [1, 1]} : vector<36x32xf32> to vector<22x32xf32>
    %269 = vector.extract_strided_slice %190 {offsets = [0, 0], sizes = [14, 32], strides = [1, 1]} : vector<36x32xf32> to vector<14x32xf32>
    %270 = tpu.concatenate %268, %269 in 0 : vector<22x32xf32>, vector<14x32xf32> -> vector<36x32xf32>
    %271 = vector.extract_strided_slice %0 {offsets = [0, 8], sizes = [36, 1], strides = [1, 1]} : vector<36x9xf32> to vector<36x1xf32>
    %272 = vector.shape_cast %271 : vector<36x1xf32> to vector<36x1xf32>
    %273 = vector.broadcast %272 : vector<36x1xf32> to vector<36x32xf32>
    %cst_59 = arith.constant 5.000000e-01 : f32
    %274 = vector.broadcast %cst_59 : f32 to vector<36x32xf32>
    %275 = arith.cmpf ogt, %273, %274 : vector<36x32xf32>
    %cst_60 = arith.constant 0.000000e+00 : f32
    %276 = vector.broadcast %cst_60 : f32 to vector<36x32xf32>
    %277 = arith.select %275, %270, %276 : vector<36x32xi1>, vector<36x32xf32>
    %278 = tpu.concatenate %200, %210, %220, %230, %237, %247, %257, %267, %277 in 1 : vector<36x32xf32>, vector<36x32xf32>, vector<36x32xf32>, vector<36x32xf32>, vector<36x32xf32>, vector<36x32xf32>, vector<36x32xf32>, vector<36x32xf32>, vector<36x32xf32> -> vector<36x288xf32>
    %279 = arith.truncf %278 : vector<36x288xf32> to vector<36x288xbf16>
    %c0_61 = arith.constant 0 : index
    %c0_62 = arith.constant 0 : index
    %280 = vector.load %arg5[%c0_61, %c0_62] : memref<288x64xbf16, #tpu.memory_space<vmem>>, vector<288x64xbf16>
    %cst_63 = arith.constant dense<0.000000e+00> : vector<36x64xf32>
    %281 = tpu.matmul %279, %280, %cst_63 {dimension_numbers = #tpu.dot_dimension_numbers<[1], [0], [0], [1], [0, 0, 1, 1], [], []>} : vector<36x288xbf16>, vector<288x64xbf16>, vector<36x64xf32> -> vector<36x64xf32>
    %c0_64 = arith.constant 0 : index
    %c0_65 = arith.constant 0 : index
    %282 = vector.load %arg6[%c0_64, %c0_65] : memref<1x64xf32, #tpu.memory_space<vmem>>, vector<1x64xf32>
    %283 = vector.broadcast %282 : vector<1x64xf32> to vector<36x64xf32>
    %284 = arith.addf %281, %283 : vector<36x64xf32>
    %285 = vector.extract_strided_slice %284 {offsets = [22, 0], sizes = [14, 64], strides = [1, 1]} : vector<36x64xf32> to vector<14x64xf32>
    %286 = vector.extract_strided_slice %284 {offsets = [0, 0], sizes = [22, 64], strides = [1, 1]} : vector<36x64xf32> to vector<22x64xf32>
    %287 = tpu.concatenate %285, %286 in 0 : vector<14x64xf32>, vector<22x64xf32> -> vector<36x64xf32>
    %288 = vector.extract_strided_slice %0 {offsets = [0, 0], sizes = [36, 1], strides = [1, 1]} : vector<36x9xf32> to vector<36x1xf32>
    %289 = vector.shape_cast %288 : vector<36x1xf32> to vector<36x1xf32>
    %290 = vector.broadcast %289 : vector<36x1xf32> to vector<36x64xf32>
    %cst_66 = arith.constant 5.000000e-01 : f32
    %291 = vector.broadcast %cst_66 : f32 to vector<36x64xf32>
    %292 = arith.cmpf ogt, %290, %291 : vector<36x64xf32>
    %cst_67 = arith.constant 0xFF800000 : f32
    %293 = vector.broadcast %cst_67 : f32 to vector<36x64xf32>
    %294 = arith.select %292, %287, %293 : vector<36x64xi1>, vector<36x64xf32>
    %295 = vector.extract_strided_slice %284 {offsets = [24, 0], sizes = [12, 64], strides = [1, 1]} : vector<36x64xf32> to vector<12x64xf32>
    %296 = vector.extract_strided_slice %284 {offsets = [0, 0], sizes = [24, 64], strides = [1, 1]} : vector<36x64xf32> to vector<24x64xf32>
    %297 = tpu.concatenate %295, %296 in 0 : vector<12x64xf32>, vector<24x64xf32> -> vector<36x64xf32>
    %298 = vector.extract_strided_slice %0 {offsets = [0, 1], sizes = [36, 1], strides = [1, 1]} : vector<36x9xf32> to vector<36x1xf32>
    %299 = vector.shape_cast %298 : vector<36x1xf32> to vector<36x1xf32>
    %300 = vector.broadcast %299 : vector<36x1xf32> to vector<36x64xf32>
    %cst_68 = arith.constant 5.000000e-01 : f32
    %301 = vector.broadcast %cst_68 : f32 to vector<36x64xf32>
    %302 = arith.cmpf ogt, %300, %301 : vector<36x64xf32>
    %cst_69 = arith.constant 0xFF800000 : f32
    %303 = vector.broadcast %cst_69 : f32 to vector<36x64xf32>
    %304 = arith.select %302, %297, %303 : vector<36x64xi1>, vector<36x64xf32>
    %305 = vector.extract_strided_slice %284 {offsets = [26, 0], sizes = [10, 64], strides = [1, 1]} : vector<36x64xf32> to vector<10x64xf32>
    %306 = vector.extract_strided_slice %284 {offsets = [0, 0], sizes = [26, 64], strides = [1, 1]} : vector<36x64xf32> to vector<26x64xf32>
    %307 = tpu.concatenate %305, %306 in 0 : vector<10x64xf32>, vector<26x64xf32> -> vector<36x64xf32>
    %308 = vector.extract_strided_slice %0 {offsets = [0, 2], sizes = [36, 1], strides = [1, 1]} : vector<36x9xf32> to vector<36x1xf32>
    %309 = vector.shape_cast %308 : vector<36x1xf32> to vector<36x1xf32>
    %310 = vector.broadcast %309 : vector<36x1xf32> to vector<36x64xf32>
    %cst_70 = arith.constant 5.000000e-01 : f32
    %311 = vector.broadcast %cst_70 : f32 to vector<36x64xf32>
    %312 = arith.cmpf ogt, %310, %311 : vector<36x64xf32>
    %cst_71 = arith.constant 0xFF800000 : f32
    %313 = vector.broadcast %cst_71 : f32 to vector<36x64xf32>
    %314 = arith.select %312, %307, %313 : vector<36x64xi1>, vector<36x64xf32>
    %315 = vector.extract_strided_slice %284 {offsets = [34, 0], sizes = [2, 64], strides = [1, 1]} : vector<36x64xf32> to vector<2x64xf32>
    %316 = vector.extract_strided_slice %284 {offsets = [0, 0], sizes = [34, 64], strides = [1, 1]} : vector<36x64xf32> to vector<34x64xf32>
    %317 = tpu.concatenate %315, %316 in 0 : vector<2x64xf32>, vector<34x64xf32> -> vector<36x64xf32>
    %318 = vector.extract_strided_slice %0 {offsets = [0, 3], sizes = [36, 1], strides = [1, 1]} : vector<36x9xf32> to vector<36x1xf32>
    %319 = vector.shape_cast %318 : vector<36x1xf32> to vector<36x1xf32>
    %320 = vector.broadcast %319 : vector<36x1xf32> to vector<36x64xf32>
    %cst_72 = arith.constant 5.000000e-01 : f32
    %321 = vector.broadcast %cst_72 : f32 to vector<36x64xf32>
    %322 = arith.cmpf ogt, %320, %321 : vector<36x64xf32>
    %cst_73 = arith.constant 0xFF800000 : f32
    %323 = vector.broadcast %cst_73 : f32 to vector<36x64xf32>
    %324 = arith.select %322, %317, %323 : vector<36x64xi1>, vector<36x64xf32>
    %325 = vector.extract_strided_slice %0 {offsets = [0, 4], sizes = [36, 1], strides = [1, 1]} : vector<36x9xf32> to vector<36x1xf32>
    %326 = vector.shape_cast %325 : vector<36x1xf32> to vector<36x1xf32>
    %327 = vector.broadcast %326 : vector<36x1xf32> to vector<36x64xf32>
    %cst_74 = arith.constant 5.000000e-01 : f32
    %328 = vector.broadcast %cst_74 : f32 to vector<36x64xf32>
    %329 = arith.cmpf ogt, %327, %328 : vector<36x64xf32>
    %cst_75 = arith.constant 0xFF800000 : f32
    %330 = vector.broadcast %cst_75 : f32 to vector<36x64xf32>
    %331 = arith.select %329, %284, %330 : vector<36x64xi1>, vector<36x64xf32>
    %332 = vector.extract_strided_slice %284 {offsets = [2, 0], sizes = [34, 64], strides = [1, 1]} : vector<36x64xf32> to vector<34x64xf32>
    %333 = vector.extract_strided_slice %284 {offsets = [0, 0], sizes = [2, 64], strides = [1, 1]} : vector<36x64xf32> to vector<2x64xf32>
    %334 = tpu.concatenate %332, %333 in 0 : vector<34x64xf32>, vector<2x64xf32> -> vector<36x64xf32>
    %335 = vector.extract_strided_slice %0 {offsets = [0, 5], sizes = [36, 1], strides = [1, 1]} : vector<36x9xf32> to vector<36x1xf32>
    %336 = vector.shape_cast %335 : vector<36x1xf32> to vector<36x1xf32>
    %337 = vector.broadcast %336 : vector<36x1xf32> to vector<36x64xf32>
    %cst_76 = arith.constant 5.000000e-01 : f32
    %338 = vector.broadcast %cst_76 : f32 to vector<36x64xf32>
    %339 = arith.cmpf ogt, %337, %338 : vector<36x64xf32>
    %cst_77 = arith.constant 0xFF800000 : f32
    %340 = vector.broadcast %cst_77 : f32 to vector<36x64xf32>
    %341 = arith.select %339, %334, %340 : vector<36x64xi1>, vector<36x64xf32>
    %342 = vector.extract_strided_slice %284 {offsets = [10, 0], sizes = [26, 64], strides = [1, 1]} : vector<36x64xf32> to vector<26x64xf32>
    %343 = vector.extract_strided_slice %284 {offsets = [0, 0], sizes = [10, 64], strides = [1, 1]} : vector<36x64xf32> to vector<10x64xf32>
    %344 = tpu.concatenate %342, %343 in 0 : vector<26x64xf32>, vector<10x64xf32> -> vector<36x64xf32>
    %345 = vector.extract_strided_slice %0 {offsets = [0, 6], sizes = [36, 1], strides = [1, 1]} : vector<36x9xf32> to vector<36x1xf32>
    %346 = vector.shape_cast %345 : vector<36x1xf32> to vector<36x1xf32>
    %347 = vector.broadcast %346 : vector<36x1xf32> to vector<36x64xf32>
    %cst_78 = arith.constant 5.000000e-01 : f32
    %348 = vector.broadcast %cst_78 : f32 to vector<36x64xf32>
    %349 = arith.cmpf ogt, %347, %348 : vector<36x64xf32>
    %cst_79 = arith.constant 0xFF800000 : f32
    %350 = vector.broadcast %cst_79 : f32 to vector<36x64xf32>
    %351 = arith.select %349, %344, %350 : vector<36x64xi1>, vector<36x64xf32>
    %352 = vector.extract_strided_slice %284 {offsets = [12, 0], sizes = [24, 64], strides = [1, 1]} : vector<36x64xf32> to vector<24x64xf32>
    %353 = vector.extract_strided_slice %284 {offsets = [0, 0], sizes = [12, 64], strides = [1, 1]} : vector<36x64xf32> to vector<12x64xf32>
    %354 = tpu.concatenate %352, %353 in 0 : vector<24x64xf32>, vector<12x64xf32> -> vector<36x64xf32>
    %355 = vector.extract_strided_slice %0 {offsets = [0, 7], sizes = [36, 1], strides = [1, 1]} : vector<36x9xf32> to vector<36x1xf32>
    %356 = vector.shape_cast %355 : vector<36x1xf32> to vector<36x1xf32>
    %357 = vector.broadcast %356 : vector<36x1xf32> to vector<36x64xf32>
    %cst_80 = arith.constant 5.000000e-01 : f32
    %358 = vector.broadcast %cst_80 : f32 to vector<36x64xf32>
    %359 = arith.cmpf ogt, %357, %358 : vector<36x64xf32>
    %cst_81 = arith.constant 0xFF800000 : f32
    %360 = vector.broadcast %cst_81 : f32 to vector<36x64xf32>
    %361 = arith.select %359, %354, %360 : vector<36x64xi1>, vector<36x64xf32>
    %362 = vector.extract_strided_slice %284 {offsets = [14, 0], sizes = [22, 64], strides = [1, 1]} : vector<36x64xf32> to vector<22x64xf32>
    %363 = vector.extract_strided_slice %284 {offsets = [0, 0], sizes = [14, 64], strides = [1, 1]} : vector<36x64xf32> to vector<14x64xf32>
    %364 = tpu.concatenate %362, %363 in 0 : vector<22x64xf32>, vector<14x64xf32> -> vector<36x64xf32>
    %365 = vector.extract_strided_slice %0 {offsets = [0, 8], sizes = [36, 1], strides = [1, 1]} : vector<36x9xf32> to vector<36x1xf32>
    %366 = vector.shape_cast %365 : vector<36x1xf32> to vector<36x1xf32>
    %367 = vector.broadcast %366 : vector<36x1xf32> to vector<36x64xf32>
    %cst_82 = arith.constant 5.000000e-01 : f32
    %368 = vector.broadcast %cst_82 : f32 to vector<36x64xf32>
    %369 = arith.cmpf ogt, %367, %368 : vector<36x64xf32>
    %cst_83 = arith.constant 0xFF800000 : f32
    %370 = vector.broadcast %cst_83 : f32 to vector<36x64xf32>
    %371 = arith.select %369, %364, %370 : vector<36x64xi1>, vector<36x64xf32>
    %372 = arith.maximumf %294, %304 : vector<36x64xf32>
    %373 = arith.maximumf %372, %314 : vector<36x64xf32>
    %374 = arith.maximumf %373, %324 : vector<36x64xf32>
    %375 = arith.maximumf %374, %331 : vector<36x64xf32>
    %376 = arith.maximumf %375, %341 : vector<36x64xf32>
    %377 = arith.maximumf %376, %351 : vector<36x64xf32>
    %378 = arith.maximumf %377, %361 : vector<36x64xf32>
    %379 = arith.maximumf %378, %371 : vector<36x64xf32>
    %cst_84 = arith.constant 0.000000e+00 : f32
    %380 = vector.broadcast %cst_84 : f32 to vector<36x64xf32>
    %381 = arith.cmpf ogt, %379, %380 : vector<36x64xf32>
    %cst_85 = arith.constant 0.00999999977 : f32
    %382 = vector.broadcast %cst_85 : f32 to vector<36x64xf32>
    %383 = arith.mulf %382, %379 : vector<36x64xf32>
    %384 = arith.select %381, %379, %383 : vector<36x64xi1>, vector<36x64xf32>
    %385 = vector.extract_strided_slice %384 {offsets = [0, 0], sizes = [2, 64], strides = [1, 1]} : vector<36x64xf32> to vector<2x64xf32>
    %386 = vector.extract_strided_slice %384 {offsets = [2, 0], sizes = [2, 64], strides = [1, 1]} : vector<36x64xf32> to vector<2x64xf32>
    %387 = vector.extract_strided_slice %384 {offsets = [4, 0], sizes = [2, 64], strides = [1, 1]} : vector<36x64xf32> to vector<2x64xf32>
    %388 = vector.extract_strided_slice %384 {offsets = [6, 0], sizes = [2, 64], strides = [1, 1]} : vector<36x64xf32> to vector<2x64xf32>
    %389 = vector.extract_strided_slice %384 {offsets = [8, 0], sizes = [2, 64], strides = [1, 1]} : vector<36x64xf32> to vector<2x64xf32>
    %390 = vector.extract_strided_slice %384 {offsets = [10, 0], sizes = [2, 64], strides = [1, 1]} : vector<36x64xf32> to vector<2x64xf32>
    %391 = vector.extract_strided_slice %384 {offsets = [12, 0], sizes = [2, 64], strides = [1, 1]} : vector<36x64xf32> to vector<2x64xf32>
    %392 = vector.extract_strided_slice %384 {offsets = [14, 0], sizes = [2, 64], strides = [1, 1]} : vector<36x64xf32> to vector<2x64xf32>
    %393 = vector.extract_strided_slice %384 {offsets = [16, 0], sizes = [2, 64], strides = [1, 1]} : vector<36x64xf32> to vector<2x64xf32>
    %394 = vector.extract_strided_slice %384 {offsets = [18, 0], sizes = [2, 64], strides = [1, 1]} : vector<36x64xf32> to vector<2x64xf32>
    %395 = vector.extract_strided_slice %384 {offsets = [20, 0], sizes = [2, 64], strides = [1, 1]} : vector<36x64xf32> to vector<2x64xf32>
    %396 = vector.extract_strided_slice %384 {offsets = [22, 0], sizes = [2, 64], strides = [1, 1]} : vector<36x64xf32> to vector<2x64xf32>
    %397 = vector.extract_strided_slice %384 {offsets = [24, 0], sizes = [2, 64], strides = [1, 1]} : vector<36x64xf32> to vector<2x64xf32>
    %398 = vector.extract_strided_slice %384 {offsets = [26, 0], sizes = [2, 64], strides = [1, 1]} : vector<36x64xf32> to vector<2x64xf32>
    %399 = vector.extract_strided_slice %384 {offsets = [28, 0], sizes = [2, 64], strides = [1, 1]} : vector<36x64xf32> to vector<2x64xf32>
    %400 = vector.extract_strided_slice %384 {offsets = [30, 0], sizes = [2, 64], strides = [1, 1]} : vector<36x64xf32> to vector<2x64xf32>
    %401 = vector.extract_strided_slice %384 {offsets = [32, 0], sizes = [2, 64], strides = [1, 1]} : vector<36x64xf32> to vector<2x64xf32>
    %402 = vector.extract_strided_slice %384 {offsets = [34, 0], sizes = [2, 64], strides = [1, 1]} : vector<36x64xf32> to vector<2x64xf32>
    %403 = tpu.concatenate %385, %386, %387, %388, %389, %390, %391, %392, %393, %394, %395, %396, %397, %398, %399, %400 in 1 : vector<2x64xf32>, vector<2x64xf32>, vector<2x64xf32>, vector<2x64xf32>, vector<2x64xf32>, vector<2x64xf32>, vector<2x64xf32>, vector<2x64xf32>, vector<2x64xf32>, vector<2x64xf32>, vector<2x64xf32>, vector<2x64xf32>, vector<2x64xf32>, vector<2x64xf32>, vector<2x64xf32>, vector<2x64xf32> -> vector<2x1024xf32>
    %404 = tpu.concatenate %401, %402 in 1 : vector<2x64xf32>, vector<2x64xf32> -> vector<2x128xf32>
    %405 = tpu.concatenate %403, %404 in 1 : vector<2x1024xf32>, vector<2x128xf32> -> vector<2x1152xf32>
    %406 = arith.truncf %405 : vector<2x1152xf32> to vector<2x1152xbf16>
    %c0_86 = arith.constant 0 : index
    %c0_87 = arith.constant 0 : index
    %407 = vector.load %arg7[%c0_86, %c0_87] : memref<1152x19xbf16, #tpu.memory_space<vmem>>, vector<1152x19xbf16>
    %cst_88 = arith.constant dense<0.000000e+00> : vector<2x19xf32>
    %408 = tpu.matmul %406, %407, %cst_88 {dimension_numbers = #tpu.dot_dimension_numbers<[1], [0], [0], [1], [0, 0, 1, 1], [], []>} : vector<2x1152xbf16>, vector<1152x19xbf16>, vector<2x19xf32> -> vector<2x19xf32>
    %c0_89 = arith.constant 0 : index
    %c0_90 = arith.constant 0 : index
    %409 = vector.load %arg8[%c0_89, %c0_90] : memref<1x19xf32, #tpu.memory_space<vmem>>, vector<1x19xf32>
    %410 = vector.broadcast %409 : vector<1x19xf32> to vector<2x19xf32>
    %411 = arith.addf %408, %410 : vector<2x19xf32>
    %412 = vector.extract_strided_slice %411 {offsets = [0, 0], sizes = [2, 18], strides = [1, 1]} : vector<2x19xf32> to vector<2x18xf32>
    %cst_91 = arith.constant 0.000000e+00 : f32
    %413 = vector.broadcast %cst_91 : f32 to vector<2x18xf32>
    %414 = arith.maximumf %412, %413 : vector<2x18xf32>
    %c0_92 = arith.constant 0 : index
    %c0_93 = arith.constant 0 : index
    %415 = vector.load %arg9[%c0_92, %c0_93] : memref<2x18xf32, #tpu.memory_space<vmem>>, vector<2x18xf32>
    tpu.vector_store %arg9[%c0_92, %c0_93], %414 {strides = array<i32>} : memref<2x18xf32, #tpu.memory_space<vmem>>, vector<2x18xf32>,
    %416 = vector.extract_strided_slice %411 {offsets = [0, 18], sizes = [2, 1], strides = [1, 1]} : vector<2x19xf32> to vector<2x1xf32>
    %c0_94 = arith.constant 0 : index
    %c0_95 = arith.constant 0 : index
    %417 = vector.load %arg10[%c0_94, %c0_95] : memref<2x1xf32, #tpu.memory_space<vmem>>, vector<2x1xf32>
    tpu.vector_store %arg10[%c0_94, %c0_95], %416 {strides = array<i32>} : memref<2x1xf32, #tpu.memory_space<vmem>>, vector<2x1xf32>,
    return
  }
  func.func @transform_0(%arg0: i32) -> (i32, i32) {
    %c0_i32 = arith.constant 0 : i32
    %c0_i32_0 = arith.constant 0 : i32
    %c0_i32_1 = arith.constant 0 : i32
    return %c0_i32, %c0_i32_0 : i32, i32
  }
  func.func @transform_1(%arg0: i32) -> (i32, i32) {
    %c0_i32 = arith.constant 0 : i32
    %c0_i32_0 = arith.constant 0 : i32
    %c0_i32_1 = arith.constant 0 : i32
    return %c0_i32, %c0_i32_0 : i32, i32
  }
  func.func @transform_2(%arg0: i32) -> (i32, i32) {
    %c0_i32 = arith.constant 0 : i32
    %c0_i32_0 = arith.constant 0 : i32
    %c0_i32_1 = arith.constant 0 : i32
    return %c0_i32, %c0_i32_0 : i32, i32
  }
  func.func @transform_3(%arg0: i32) -> (i32, i32) {
    %c0_i32 = arith.constant 0 : i32
    %c0_i32_0 = arith.constant 0 : i32
    %c0_i32_1 = arith.constant 0 : i32
    return %c0_i32, %c0_i32_0 : i32, i32
  }
  func.func @transform_4(%arg0: i32) -> (i32, i32) {
    %c0_i32 = arith.constant 0 : i32
    %c0_i32_0 = arith.constant 0 : i32
    %c0_i32_1 = arith.constant 0 : i32
    return %c0_i32, %c0_i32_0 : i32, i32
  }
  func.func @transform_5(%arg0: i32) -> (i32, i32) {
    %c0_i32 = arith.constant 0 : i32
    %c0_i32_0 = arith.constant 0 : i32
    %c0_i32_1 = arith.constant 0 : i32
    return %c0_i32, %c0_i32_0 : i32, i32
  }
  func.func @transform_6(%arg0: i32) -> (i32, i32) {
    %c0_i32 = arith.constant 0 : i32
    %c0_i32_0 = arith.constant 0 : i32
    %c0_i32_1 = arith.constant 0 : i32
    return %c0_i32, %c0_i32_0 : i32, i32
  }
  func.func @transform_7(%arg0: i32) -> (i32, i32) {
    %c0_i32 = arith.constant 0 : i32
    %c0_i32_0 = arith.constant 0 : i32
    %c0_i32_1 = arith.constant 0 : i32
    return %c0_i32, %c0_i32_0 : i32, i32
  }
  func.func @transform_8(%arg0: i32) -> (i32, i32) {
    %c0_i32 = arith.constant 0 : i32
    %c0_i32_0 = arith.constant 0 : i32
    %c0_i32_1 = arith.constant 0 : i32
    return %c0_i32, %c0_i32_0 : i32, i32
  }
  func.func @transform_9(%arg0: i32) -> (i32, i32) {
    %c0_i32 = arith.constant 0 : i32
    %c0_i32_0 = arith.constant 0 : i32
    %c0_i32_1 = arith.constant 0 : i32
    return %c0_i32, %c0_i32_0 : i32, i32
  }
}

</mosaic_0001>

<llo_original>
// kernel: prediction_forward.1
$region0: #{prediction_forward.1}
  #allocation0 [shape = 'u32[]', space=smem, size = 0x4, offset = 0x4, fixed_abs, tag = 'smem constant byte address 0x4 - core index']
  #allocation1 [shape = 'u32[72,128]{1,0:T(1,128)}', space=vmem, size = 0x9000, scoped, tag = 'internal scratch']
  %s0 = inlined_call_operand.vmem [shape: f32[36,2], index: 0, kind: input, shape index: {}]
  %s1 = inlined_call_operand.vmem [shape: f32[36,9], index: 1, kind: input, shape index: {}]
  %s2 = inlined_call_operand.vmem [shape: bf16[18,32], index: 2, kind: input, shape index: {}]
  %s3 = inlined_call_operand.vmem [shape: f32[1,32], index: 3, kind: input, shape index: {}]
  %s4 = inlined_call_operand.vmem [shape: bf16[288,64], index: 4, kind: input, shape index: {}]
  %s5 = inlined_call_operand.vmem [shape: f32[1,64], index: 5, kind: input, shape index: {}]
  %s6 = inlined_call_operand.vmem [shape: bf16[1152,19], index: 6, kind: input, shape index: {}]
  %s7 = inlined_call_operand.vmem [shape: f32[1,19], index: 7, kind: input, shape index: {}]
  %s8 = inlined_call_operand.hbm [shape: f32[2,18], index: 8, kind: output, shape index: {0}]
  %s9 = inlined_call_operand.vmem [shape: f32[2,1], index: 9, kind: output, shape index: {1}]
  %10 = xla_tuple %s8, %s9
  %s11 = sld [smem:[#allocation0]]
  $region50: #{prediction_forward.1} parent=0
    _
  %s13 = ssub.s32 1, %s11
  %s14 = scalar_select 0, %s13, %s11
  $region1: #{prediction_forward.1} parent=0
    #allocation2 [shape = 'u8[1024]{0}', space=vmem, size = 0x400, scoped, tag = 'output window, operand 0, single buffered']
    #allocation3 [shape = 's32[1]{0}', space=sflag, size = 0x4, scoped, tag = 'scoped memory for prediction_forward.1']
    %15 = vsyncpa [#allocation3], 0
    // Predicated region
    $region2: #{prediction_forward.1} parent=1 // pred_check
      _
    $region3: #{prediction_forward.1} parent=1 // pred_check_branch
      %17 = sbr.rel (0) target = $region5
    $region4: #{prediction_forward.1} parent=1 // pred_region
      _
    $region5: #{prediction_forward.1} parent=1 // pred_fallthru
      _
    // Predicated region
    $region6: #{prediction_forward.1} parent=1 // pred_check
      _
    $region7: #{prediction_forward.1} parent=1 // pred_check_branch
      %19 = sbr.rel (0) target = $region9
    $region8: #{prediction_forward.1} parent=1 // pred_region
      _
    $region9: #{prediction_forward.1} parent=1 // pred_fallthru
      _
    // Predicated region
    $region10: #{prediction_forward.1} parent=1 // pred_check
      _
    $region11: #{prediction_forward.1} parent=1 // pred_check_branch
      %21 = sbr.rel (0) target = $region13
    $region12: #{prediction_forward.1} parent=1 // pred_region
      _
    $region13: #{prediction_forward.1} parent=1 // pred_fallthru
      _
    // Predicated region
    $region14: #{prediction_forward.1} parent=1 // pred_check
      _
    $region15: #{prediction_forward.1} parent=1 // pred_check_branch
      %23 = sbr.rel (0) target = $region17
    $region16: #{prediction_forward.1} parent=1 // pred_region
      _
    $region17: #{prediction_forward.1} parent=1 // pred_fallthru
      _
    // Predicated region
    $region18: #{prediction_forward.1} parent=1 // pred_check
      _
    $region19: #{prediction_forward.1} parent=1 // pred_check_branch
      %25 = sbr.rel (0) target = $region21
    $region20: #{prediction_forward.1} parent=1 // pred_region
      _
    $region21: #{prediction_forward.1} parent=1 // pred_fallthru
      _
    // Predicated region
    $region22: #{prediction_forward.1} parent=1 // pred_check
      _
    $region23: #{prediction_forward.1} parent=1 // pred_check_branch
      %27 = sbr.rel (0) target = $region25
    $region24: #{prediction_forward.1} parent=1 // pred_region
      _
    $region25: #{prediction_forward.1} parent=1 // pred_fallthru
      _
    // Predicated region
    $region26: #{prediction_forward.1} parent=1 // pred_check
      _
    $region27: #{prediction_forward.1} parent=1 // pred_check_branch
      %29 = sbr.rel (0) target = $region29
    $region28: #{prediction_forward.1} parent=1 // pred_region
      _
    $region29: #{prediction_forward.1} parent=1 // pred_fallthru
      _
    // Predicated region
    $region30: #{prediction_forward.1} parent=1 // pred_check
      _
    $region31: #{prediction_forward.1} parent=1 // pred_check_branch
      %31 = sbr.rel (0) target = $region33
    $region32: #{prediction_forward.1} parent=1 // pred_region
      _
    $region33: #{prediction_forward.1} parent=1 // pred_fallthru
      _
    %v33 = vld [vmem:[%s1] sm:$0xff]
    %v34 = vld [vmem:[%s1 + $0x8] sm:$0xff]
    %v35 = vld [vmem:[%s1 + $0x10] sm:$0xff]
    %v36 = vld [vmem:[%s1 + $0x18] sm:$0xff]
    %v37 = vld [vmem:[%s1 + $0x20] sm:$0xf]
    %v38 = vld [vmem:[%s0] sm:$0xff]
    %v39 = vld [vmem:[%s0 + $0x8] sm:$0xff]
    %v40 = vld [vmem:[%s0 + $0x10] sm:$0xff]
    %v41 = vld [vmem:[%s0 + $0x18] sm:$0xff]
    %v42 = vld [vmem:[%s0 + $0x20] sm:$0xf]
    %vm46 = vcmask 1041408
    %v47 = vrot.slane %v40, 6
    %v48 = vrot.slane %v41, 6
    %v49 = vsel %vm46, %v47, %v48
    %v50 = vrot.slane %v42, 6
    %v51 = vsel %vm46, %v48, %v50
    %vm56 = vcmask 1045504
    %v57 = vrot.slane %v38, 2
    %v58 = vrot.slane %v39, 2
    %v59 = vsel %vm56, %v57, %v58
    %v60 = vrot.slane %v40, 2
    %v61 = vsel %vm56, %v58, %v60
    %v66 = vsel %vm56, %v51, %v57
    %68 = vset.pattern.permute.xlu0 0
    %69 = vperm.xlu0 %68, %v33
    %v70 = vpop.permute.xlu0 %69
    %73 = vset.pattern.permute.xlu0 0
    %74 = vperm.xlu0 %73, %v34
    %v75 = vpop.permute.xlu0 %74
    %78 = vset.pattern.permute.xlu0 0
    %79 = vperm.xlu0 %78, %v35
    %v80 = vpop.permute.xlu0 %79
    %83 = vset.pattern.permute.xlu0 0
    %84 = vperm.xlu0 %83, %v36
    %v85 = vpop.permute.xlu0 %84
    %88 = vset.pattern.permute.xlu0 0
    %89 = vperm.xlu0 %88, %v37
    %v90 = vpop.permute.xlu0 %89
    %vm92 = vcmp.gt.f32.partialorder %v70, 0.5
    %vm93 = vcmp.gt.f32.partialorder %v75, 0.5
    %vm94 = vcmp.gt.f32.partialorder %v80, 0.5
    %vm95 = vcmp.gt.f32.partialorder %v85, 0.5
    %vm96 = vcmp.gt.f32.partialorder %v90, 0.5
    %v97 = vsel %vm92, %v49, 0.0
    %v98 = vsel %vm93, %v66, 0.0
    %v99 = vsel %vm94, %v59, 0.0
    %v100 = vsel %vm95, %v61, 0.0
    %v101 = vsel %vm96, %v60, 0.0
    %vm102 = vcmask 1043456
    %v103 = vrot.slane %v38, 4
    %v104 = vrot.slane %v39, 4
    %v105 = vsel %vm102, %v103, %v104
    %v106 = vrot.slane %v40, 4
    %v107 = vsel %vm102, %v104, %v106
    %v112 = vsel %vm102, %v42, %v103
    %113 = vset.pattern.permute.xlu0 1
    %114 = vperm.xlu0 %113, %v33
    %v115 = vpop.permute.xlu0 %114
    %117 = vset.pattern.permute.xlu0 1
    %118 = vperm.xlu0 %117, %v34
    %v119 = vpop.permute.xlu0 %118
    %121 = vset.pattern.permute.xlu0 1
    %122 = vperm.xlu0 %121, %v35
    %v123 = vpop.permute.xlu0 %122
    %125 = vset.pattern.permute.xlu0 1
    %126 = vperm.xlu0 %125, %v36
    %v127 = vpop.permute.xlu0 %126
    %129 = vset.pattern.permute.xlu0 1
    %130 = vperm.xlu0 %129, %v37
    %v131 = vpop.permute.xlu0 %130
    %vm133 = vcmp.gt.f32.partialorder %v115, 0.5
    %vm134 = vcmp.gt.f32.partialorder %v119, 0.5
    %vm135 = vcmp.gt.f32.partialorder %v123, 0.5
    %vm136 = vcmp.gt.f32.partialorder %v127, 0.5
    %vm137 = vcmp.gt.f32.partialorder %v131, 0.5
    %v138 = vsel %vm133, %v41, 0.0
    %v139 = vsel %vm134, %v112, 0.0
    %v140 = vsel %vm135, %v105, 0.0
    %v141 = vsel %vm136, %v107, 0.0
    %v142 = vsel %vm137, %v106, 0.0
    %v143 = vrot.slane %v41, 2
    %v144 = vrot.slane %v42, 2
    %v145 = vsel %vm56, %v143, %v144
    %v148 = vrot.slane %v38, 6
    %v149 = vrot.slane %v39, 6
    %v150 = vsel %vm46, %v148, %v149
    %v151 = vsel %vm46, %v149, %v47
    %v155 = vsel %vm46, %v144, %v148
    %156 = vset.pattern.permute.xlu0 2
    %157 = vperm.xlu0 %156, %v33
    %v158 = vpop.permute.xlu0 %157
    %160 = vset.pattern.permute.xlu0 2
    %161 = vperm.xlu0 %160, %v34
    %v162 = vpop.permute.xlu0 %161
    %164 = vset.pattern.permute.xlu0 2
    %165 = vperm.xlu0 %164, %v35
    %v166 = vpop.permute.xlu0 %165
    %168 = vset.pattern.permute.xlu0 2
    %169 = vperm.xlu0 %168, %v36
    %v170 = vpop.permute.xlu0 %169
    %172 = vset.pattern.permute.xlu0 2
    %173 = vperm.xlu0 %172, %v37
    %v174 = vpop.permute.xlu0 %173
    %vm176 = vcmp.gt.f32.partialorder %v158, 0.5
    %vm177 = vcmp.gt.f32.partialorder %v162, 0.5
    %vm178 = vcmp.gt.f32.partialorder %v166, 0.5
    %vm179 = vcmp.gt.f32.partialorder %v170, 0.5
    %vm180 = vcmp.gt.f32.partialorder %v174, 0.5
    %v181 = vsel %vm176, %v145, 0.0
    %v182 = vsel %vm177, %v155, 0.0
    %v183 = vsel %vm178, %v150, 0.0
    %v184 = vsel %vm179, %v151, 0.0
    %v185 = vsel %vm180, %v49, 0.0
    %186 = vset.pattern.permute.xlu0 3
    %187 = vperm.xlu0 %186, %v33
    %v188 = vpop.permute.xlu0 %187
    %190 = vset.pattern.permute.xlu0 3
    %191 = vperm.xlu0 %190, %v34
    %v192 = vpop.permute.xlu0 %191
    %194 = vset.pattern.permute.xlu0 3
    %195 = vperm.xlu0 %194, %v35
    %v196 = vpop.permute.xlu0 %195
    %198 = vset.pattern.permute.xlu0 3
    %199 = vperm.xlu0 %198, %v36
    %v200 = vpop.permute.xlu0 %199
    %202 = vset.pattern.permute.xlu0 3
    %203 = vperm.xlu0 %202, %v37
    %v204 = vpop.permute.xlu0 %203
    %vm206 = vcmp.gt.f32.partialorder %v188, 0.5
    %vm207 = vcmp.gt.f32.partialorder %v192, 0.5
    %vm208 = vcmp.gt.f32.partialorder %v196, 0.5
    %vm209 = vcmp.gt.f32.partialorder %v200, 0.5
    %vm210 = vcmp.gt.f32.partialorder %v204, 0.5
    %v211 = vsel %vm206, %v155, 0.0
    %v212 = vsel %vm207, %v150, 0.0
    %v213 = vsel %vm208, %v151, 0.0
    %v214 = vsel %vm209, %v49, 0.0
    %v215 = vsel %vm210, %v51, 0.0
    %216 = vset.pattern.permute.xlu0 4
    %217 = vperm.xlu0 %216, %v33
    %v218 = vpop.permute.xlu0 %217
    %220 = vset.pattern.permute.xlu0 4
    %221 = vperm.xlu0 %220, %v34
    %v222 = vpop.permute.xlu0 %221
    %224 = vset.pattern.permute.xlu0 4
    %225 = vperm.xlu0 %224, %v35
    %v226 = vpop.permute.xlu0 %225
    %228 = vset.pattern.permute.xlu0 4
    %229 = vperm.xlu0 %228, %v36
    %v230 = vpop.permute.xlu0 %229
    %232 = vset.pattern.permute.xlu0 4
    %233 = vperm.xlu0 %232, %v37
    %v234 = vpop.permute.xlu0 %233
    %vm236 = vcmp.gt.f32.partialorder %v218, 0.5
    %vm237 = vcmp.gt.f32.partialorder %v222, 0.5
    %vm238 = vcmp.gt.f32.partialorder %v226, 0.5
    %vm239 = vcmp.gt.f32.partialorder %v230, 0.5
    %vm240 = vcmp.gt.f32.partialorder %v234, 0.5
    %v241 = vsel %vm236, %v38, 0.0
    %v242 = vsel %vm237, %v39, 0.0
    %v243 = vsel %vm238, %v40, 0.0
    %v244 = vsel %vm239, %v41, 0.0
    %v245 = vsel %vm240, %v42, 0.0
    %v246 = vsel %vm56, %v60, %v143
    %248 = vset.pattern.permute.xlu0 5
    %249 = vperm.xlu0 %248, %v33
    %v250 = vpop.permute.xlu0 %249
    %252 = vset.pattern.permute.xlu0 5
    %253 = vperm.xlu0 %252, %v34
    %v254 = vpop.permute.xlu0 %253
    %256 = vset.pattern.permute.xlu0 5
    %257 = vperm.xlu0 %256, %v35
    %v258 = vpop.permute.xlu0 %257
    %260 = vset.pattern.permute.xlu0 5
    %261 = vperm.xlu0 %260, %v36
    %v262 = vpop.permute.xlu0 %261
    %264 = vset.pattern.permute.xlu0 5
    %265 = vperm.xlu0 %264, %v37
    %v266 = vpop.permute.xlu0 %265
    %vm268 = vcmp.gt.f32.partialorder %v250, 0.5
    %vm269 = vcmp.gt.f32.partialorder %v254, 0.5
    %vm270 = vcmp.gt.f32.partialorder %v258, 0.5
    %vm271 = vcmp.gt.f32.partialorder %v262, 0.5
    %vm272 = vcmp.gt.f32.partialorder %v266, 0.5
    %v273 = vsel %vm268, %v59, 0.0
    %v274 = vsel %vm269, %v61, 0.0
    %v275 = vsel %vm270, %v246, 0.0
    %v276 = vsel %vm271, %v145, 0.0
    %v277 = vsel %vm272, %v155, 0.0
    %278 = vset.pattern.permute.xlu0 6
    %279 = vperm.xlu0 %278, %v33
    %v280 = vpop.permute.xlu0 %279
    %282 = vset.pattern.permute.xlu0 6
    %283 = vperm.xlu0 %282, %v34
    %v284 = vpop.permute.xlu0 %283
    %286 = vset.pattern.permute.xlu0 6
    %287 = vperm.xlu0 %286, %v35
    %v288 = vpop.permute.xlu0 %287
    %290 = vset.pattern.permute.xlu0 6
    %291 = vperm.xlu0 %290, %v36
    %v292 = vpop.permute.xlu0 %291
    %294 = vset.pattern.permute.xlu0 6
    %295 = vperm.xlu0 %294, %v37
    %v296 = vpop.permute.xlu0 %295
    %vm298 = vcmp.gt.f32.partialorder %v280, 0.5
    %vm299 = vcmp.gt.f32.partialorder %v284, 0.5
    %vm300 = vcmp.gt.f32.partialorder %v288, 0.5
    %vm301 = vcmp.gt.f32.partialorder %v292, 0.5
    %vm302 = vcmp.gt.f32.partialorder %v296, 0.5
    %v303 = vsel %vm298, %v61, 0.0
    %v304 = vsel %vm299, %v246, 0.0
    %v305 = vsel %vm300, %v145, 0.0
    %v306 = vsel %vm301, %v155, 0.0
    %v307 = vsel %vm302, %v150, 0.0
    %v308 = vrot.slane %v41, 4
    %v309 = vsel %vm102, %v106, %v308
    %v310 = vrot.slane %v42, 4
    %v311 = vsel %vm102, %v308, %v310
    %314 = vset.pattern.permute.xlu0 7
    %315 = vperm.xlu0 %314, %v33
    %v316 = vpop.permute.xlu0 %315
    %318 = vset.pattern.permute.xlu0 7
    %319 = vperm.xlu0 %318, %v34
    %v320 = vpop.permute.xlu0 %319
    %322 = vset.pattern.permute.xlu0 7
    %323 = vperm.xlu0 %322, %v35
    %v324 = vpop.permute.xlu0 %323
    %326 = vset.pattern.permute.xlu0 7
    %327 = vperm.xlu0 %326, %v36
    %v328 = vpop.permute.xlu0 %327
    %330 = vset.pattern.permute.xlu0 7
    %331 = vperm.xlu0 %330, %v37
    %v332 = vpop.permute.xlu0 %331
    %vm334 = vcmp.gt.f32.partialorder %v316, 0.5
    %vm335 = vcmp.gt.f32.partialorder %v320, 0.5
    %vm336 = vcmp.gt.f32.partialorder %v324, 0.5
    %vm337 = vcmp.gt.f32.partialorder %v328, 0.5
    %vm338 = vcmp.gt.f32.partialorder %v332, 0.5
    %v339 = vsel %vm334, %v107, 0.0
    %v340 = vsel %vm335, %v309, 0.0
    %v341 = vsel %vm336, %v311, 0.0
    %v342 = vsel %vm337, %v38, 0.0
    %v343 = vsel %vm338, %v39, 0.0
    %345 = vset.pattern.permute.xlu0 8
    %346 = vperm.xlu0 %345, %v33
    %v347 = vpop.permute.xlu0 %346
    %349 = vset.pattern.permute.xlu0 8
    %350 = vperm.xlu0 %349, %v34
    %v351 = vpop.permute.xlu0 %350
    %353 = vset.pattern.permute.xlu0 8
    %354 = vperm.xlu0 %353, %v35
    %v355 = vpop.permute.xlu0 %354
    %357 = vset.pattern.permute.xlu0 8
    %358 = vperm.xlu0 %357, %v36
    %v359 = vpop.permute.xlu0 %358
    %361 = vset.pattern.permute.xlu0 8
    %362 = vperm.xlu0 %361, %v37
    %v363 = vpop.permute.xlu0 %362
    %vm365 = vcmp.gt.f32.partialorder %v347, 0.5
    %vm366 = vcmp.gt.f32.partialorder %v351, 0.5
    %vm367 = vcmp.gt.f32.partialorder %v355, 0.5
    %vm368 = vcmp.gt.f32.partialorder %v359, 0.5
    %vm369 = vcmp.gt.f32.partialorder %v363, 0.5
    %v370 = vsel %vm365, %v151, 0.0
    %v371 = vsel %vm366, %v49, 0.0
    %v372 = vsel %vm367, %v66, 0.0
    %v373 = vsel %vm368, %v59, 0.0
    %v374 = vsel %vm369, %v58, 0.0
    %380 = vrot.lane.b32.xlu0 %v138, 2
    %v381 = vpop.permute.xlu0 %380
    %382 = vrot.lane.b32.xlu0 %v139, 2
    %v383 = vpop.permute.xlu0 %382
    %384 = vrot.lane.b32.xlu0 %v140, 2
    %v385 = vpop.permute.xlu0 %384
    %386 = vrot.lane.b32.xlu0 %v141, 2
    %v387 = vpop.permute.xlu0 %386
    %388 = vrot.lane.b32.xlu0 %v142, 2
    %v389 = vpop.permute.xlu0 %388
    %400 = vrot.lane.b32.xlu0 %v181, 4
    %v401 = vpop.permute.xlu0 %400
    %402 = vrot.lane.b32.xlu0 %v182, 4
    %v403 = vpop.permute.xlu0 %402
    %404 = vrot.lane.b32.xlu0 %v183, 4
    %v405 = vpop.permute.xlu0 %404
    %406 = vrot.lane.b32.xlu0 %v184, 4
    %v407 = vpop.permute.xlu0 %406
    %408 = vrot.lane.b32.xlu0 %v185, 4
    %v409 = vpop.permute.xlu0 %408
    %420 = vrot.lane.b32.xlu0 %v211, 6
    %v421 = vpop.permute.xlu0 %420
    %422 = vrot.lane.b32.xlu0 %v212, 6
    %v423 = vpop.permute.xlu0 %422
    %424 = vrot.lane.b32.xlu0 %v213, 6
    %v425 = vpop.permute.xlu0 %424
    %426 = vrot.lane.b32.xlu0 %v214, 6
    %v427 = vpop.permute.xlu0 %426
    %428 = vrot.lane.b32.xlu0 %v215, 6
    %v429 = vpop.permute.xlu0 %428
    %440 = vrot.lane.b32.xlu0 %v241, 8
    %v441 = vpop.permute.xlu0 %440
    %442 = vrot.lane.b32.xlu0 %v242, 8
    %v443 = vpop.permute.xlu0 %442
    %444 = vrot.lane.b32.xlu0 %v243, 8
    %v445 = vpop.permute.xlu0 %444
    %446 = vrot.lane.b32.xlu0 %v244, 8
    %v447 = vpop.permute.xlu0 %446
    %448 = vrot.lane.b32.xlu0 %v245, 8
    %v449 = vpop.permute.xlu0 %448
    %460 = vrot.lane.b32.xlu0 %v273, 10
    %v461 = vpop.permute.xlu0 %460
    %462 = vrot.lane.b32.xlu0 %v274, 10
    %v463 = vpop.permute.xlu0 %462
    %464 = vrot.lane.b32.xlu0 %v275, 10
    %v465 = vpop.permute.xlu0 %464
    %466 = vrot.lane.b32.xlu0 %v276, 10
    %v467 = vpop.permute.xlu0 %466
    %468 = vrot.lane.b32.xlu0 %v277, 10
    %v469 = vpop.permute.xlu0 %468
    %480 = vrot.lane.b32.xlu0 %v303, 12
    %v481 = vpop.permute.xlu0 %480
    %482 = vrot.lane.b32.xlu0 %v304, 12
    %v483 = vpop.permute.xlu0 %482
    %484 = vrot.lane.b32.xlu0 %v305, 12
    %v485 = vpop.permute.xlu0 %484
    %486 = vrot.lane.b32.xlu0 %v306, 12
    %v487 = vpop.permute.xlu0 %486
    %488 = vrot.lane.b32.xlu0 %v307, 12
    %v489 = vpop.permute.xlu0 %488
    %500 = vrot.lane.b32.xlu0 %v339, 14
    %v501 = vpop.permute.xlu0 %500
    %502 = vrot.lane.b32.xlu0 %v340, 14
    %v503 = vpop.permute.xlu0 %502
    %504 = vrot.lane.b32.xlu0 %v341, 14
    %v505 = vpop.permute.xlu0 %504
    %506 = vrot.lane.b32.xlu0 %v342, 14
    %v507 = vpop.permute.xlu0 %506
    %508 = vrot.lane.b32.xlu0 %v343, 14
    %v509 = vpop.permute.xlu0 %508
    %520 = vrot.lane.b32.xlu0 %v370, 16
    %v521 = vpop.permute.xlu0 %520
    %522 = vrot.lane.b32.xlu0 %v371, 16
    %v523 = vpop.permute.xlu0 %522
    %524 = vrot.lane.b32.xlu0 %v372, 16
    %v525 = vpop.permute.xlu0 %524
    %526 = vrot.lane.b32.xlu0 %v373, 16
    %v527 = vpop.permute.xlu0 %526
    %528 = vrot.lane.b32.xlu0 %v374, 16
    %v529 = vpop.permute.xlu0 %528
    %vm535 = vcmask 15360
    %v536 = vsel %vm535, %v97, %v381
    %v537 = vsel %vm535, %v98, %v383
    %v538 = vsel %vm535, %v99, %v385
    %v539 = vsel %vm535, %v100, %v387
    %v540 = vsel %vm535, %v101, %v389
    %vm541 = vcmask 31744
    %v542 = vsel %vm541, %v536, %v401
    %v543 = vsel %vm541, %v537, %v403
    %v544 = vsel %vm541, %v538, %v405
    %v545 = vsel %vm541, %v539, %v407
    %v546 = vsel %vm541, %v540, %v409
    %vm547 = vcmask 48128
    %v548 = vsel %vm547, %v542, %v421
    %v549 = vsel %vm547, %v543, %v423
    %v550 = vsel %vm547, %v544, %v425
    %v551 = vsel %vm547, %v545, %v427
    %v552 = vsel %vm547, %v546, %v429
    %vm553 = vcmask 64512
    %v554 = vsel %vm553, %v548, %v441
    %v555 = vsel %vm553, %v549, %v443
    %v556 = vsel %vm553, %v550, %v445
    %v557 = vsel %vm553, %v551, %v447
    %v558 = vsel %vm553, %v552, %v449
    %vm559 = vcmask 80896
    %v560 = vsel %vm559, %v554, %v461
    %v561 = vsel %vm559, %v555, %v463
    %v562 = vsel %vm559, %v556, %v465
    %v563 = vsel %vm559, %v557, %v467
    %v564 = vsel %vm559, %v558, %v469
    %vm565 = vcmask 97280
    %v566 = vsel %vm565, %v560, %v481
    %v567 = vsel %vm565, %v561, %v483
    %v568 = vsel %vm565, %v562, %v485
    %v569 = vsel %vm565, %v563, %v487
    %v570 = vsel %vm565, %v564, %v489
    %vm571 = vcmask 113664
    %v572 = vsel %vm571, %v566, %v501
    %v573 = vsel %vm571, %v567, %v503
    %v574 = vsel %vm571, %v568, %v505
    %v575 = vsel %vm571, %v569, %v507
    %v576 = vsel %vm571, %v570, %v509
    %vm577 = vcmask 130048
    %v578 = vsel %vm577, %v572, %v521
    %v579 = vsel %vm577, %v573, %v523
    %v580 = vsel %vm577, %v574, %v525
    %v581 = vsel %vm577, %v575, %v527
    %v582 = vsel %vm577, %v576, %v529
    %v583 = vpack.c.bf16 %v579, %v578
    %v584 = vpack.c.bf16 %v581, %v580
    %v585 = vpack.c.bf16 %v582, %v582
    %v586 = vld [vmem:[%s2] sm:$0xf]
    %v587 = vld [vmem:[%s2 + $0x4] sm:$0xf]
    %v588 = vld [vmem:[%s2 + $0x8] sm:$0x1]
    %v589 = vld [vmem:[%s3] sm:$0x1]
    %v591 = vperm.slane %v589, 0
    %v596 = vunpack.c.l.b16 %v586
    %v597 = vunpack.c.l.b16 %v587
    %v598 = vunpack.c.l.b16 %v588
    %v599 = vpack.c.b16 %v597, %v596
    %v600 = vpack.c.b16 %v598, %v598
    %vm602 = vcmask 146432
    %v604 = vsel %vm602, %v583, 0
    %v607 = vsel %vm602, %v584, 0
    %v610 = vsel %vm602, %v585, 0
    %vm612 = vcmask 1040384
    %v614 = vsel %vm612, %v600, 0
    %616 = vmatpush.bf16.msra.mxu0 0
    %617 = vmatpush.bf16.msra.mxu0 0
    %618 = vmatpush.bf16.msra.mxu0 0
    %619 = vmatpush.bf16.msra.mxu0 0
    %620 = vmatpush.bf16.msra.mxu0 0
    %621 = vmatpush.bf16.msra.mxu0 0
    %622 = vmatpush.bf16.msra.mxu0 %v614
    %623 = vmatpush.bf16.msra.mxu0 %v599
    %624 = vmatmul.bf16.gmra.mxu0 %v604
    %v625 = vpop.f32.mrf.mxu0
    %v626 = vadd.f32 %v591, %v625
    %v627 = vpop.f32.mrf.mxu0
    %v628 = vadd.f32 %v591, %v627
    %629 = vmatmul.bf16.gmra.mxu0 %v607
    %v630 = vpop.f32.mrf.mxu0
    %v631 = vadd.f32 %v591, %v630
    %v632 = vpop.f32.mrf.mxu0
    %v633 = vadd.f32 %v591, %v632
    %634 = vmatmul.bf16.gmra.mxu0 %v610
    %v635 = vpop.f32.mrf.mxu0
    %v636 = vadd.f32 %v591, %v635
    %v637 = vpop.f32.mrf.mxu0
    %638 = vdwg.mxu0
    %v642 = vrot.slane %v631, 6
    %v643 = vrot.slane %v633, 6
    %v644 = vsel %vm46, %v642, %v643
    %v645 = vrot.slane %v636, 6
    %v646 = vsel %vm46, %v643, %v645
    %v651 = vrot.slane %v626, 2
    %v652 = vrot.slane %v628, 2
    %v653 = vsel %vm56, %v651, %v652
    %v654 = vrot.slane %v631, 2
    %v655 = vsel %vm56, %v652, %v654
    %v660 = vsel %vm56, %v646, %v651
    %v661 = vsel %vm92, %v644, -inf
    %v662 = vsel %vm93, %v660, -inf
    %v663 = vsel %vm94, %v653, -inf
    %v664 = vsel %vm95, %v655, -inf
    %v665 = vsel %vm96, %v654, -inf
    %v666 = vrot.slane %v626, 4
    %v667 = vrot.slane %v628, 4
    %v668 = vsel %vm102, %v666, %v667
    %v669 = vrot.slane %v631, 4
    %v670 = vsel %vm102, %v667, %v669
    %v675 = vsel %vm102, %v636, %v666
    %v676 = vsel %vm133, %v633, -inf
    %v677 = vsel %vm134, %v675, -inf
    %v678 = vsel %vm135, %v668, -inf
    %v679 = vsel %vm136, %v670, -inf
    %v680 = vsel %vm137, %v669, -inf
    %v681 = vrot.slane %v633, 2
    %v682 = vrot.slane %v636, 2
    %v683 = vsel %vm56, %v681, %v682
    %v686 = vrot.slane %v626, 6
    %v687 = vrot.slane %v628, 6
    %v688 = vsel %vm46, %v686, %v687
    %v689 = vsel %vm46, %v687, %v642
    %v693 = vsel %vm46, %v682, %v686
    %v694 = vsel %vm176, %v683, -inf
    %v695 = vsel %vm177, %v693, -inf
    %v696 = vsel %vm178, %v688, -inf
    %v697 = vsel %vm179, %v689, -inf
    %v698 = vsel %vm180, %v644, -inf
    %v699 = vsel %vm206, %v693, -inf
    %v700 = vsel %vm207, %v688, -inf
    %v701 = vsel %vm208, %v689, -inf
    %v702 = vsel %vm209, %v644, -inf
    %v703 = vsel %vm210, %v646, -inf
    %v704 = vsel %vm236, %v626, -inf
    %v705 = vsel %vm237, %v628, -inf
    %v706 = vsel %vm238, %v631, -inf
    %v707 = vsel %vm239, %v633, -inf
    %v708 = vsel %vm240, %v636, -inf
    %v709 = vsel %vm56, %v654, %v681
    %v711 = vsel %vm268, %v653, -inf
    %v712 = vsel %vm269, %v655, -inf
    %v713 = vsel %vm270, %v709, -inf
    %v714 = vsel %vm271, %v683, -inf
    %v715 = vsel %vm272, %v693, -inf
    %v716 = vsel %vm298, %v655, -inf
    %v717 = vsel %vm299, %v709, -inf
    %v718 = vsel %vm300, %v683, -inf
    %v719 = vsel %vm301, %v693, -inf
    %v720 = vsel %vm302, %v688, -inf
    %v721 = vrot.slane %v633, 4
    %v722 = vsel %vm102, %v669, %v721
    %v723 = vrot.slane %v636, 4
    %v724 = vsel %vm102, %v721, %v723
    %v727 = vsel %vm334, %v670, -inf
    %v728 = vsel %vm335, %v722, -inf
    %v729 = vsel %vm336, %v724, -inf
    %v730 = vsel %vm337, %v626, -inf
    %v731 = vsel %vm338, %v628, -inf
    %v733 = vsel %vm365, %v689, -inf
    %v734 = vsel %vm366, %v644, -inf
    %v735 = vsel %vm367, %v660, -inf
    %v736 = vsel %vm368, %v653, -inf
    %v737 = vsel %vm369, %v652, -inf
    %v738 = vmax.f32 %v661, %v676
    %v739 = vmax.f32 %v662, %v677
    %v740 = vmax.f32 %v663, %v678
    %v741 = vmax.f32 %v664, %v679
    %v742 = vmax.f32 %v665, %v680
    %v743 = vmax.f32 %v738, %v694
    %v744 = vmax.f32 %v739, %v695
    %v745 = vmax.f32 %v740, %v696
    %v746 = vmax.f32 %v741, %v697
    %v747 = vmax.f32 %v742, %v698
    %v748 = vmax.f32 %v743, %v699
    %v749 = vmax.f32 %v744, %v700
    %v750 = vmax.f32 %v745, %v701
    %v751 = vmax.f32 %v746, %v702
    %v752 = vmax.f32 %v747, %v703
    %v753 = vmax.f32 %v748, %v704
    %v754 = vmax.f32 %v749, %v705
    %v755 = vmax.f32 %v750, %v706
    %v756 = vmax.f32 %v751, %v707
    %v757 = vmax.f32 %v752, %v708
    %v758 = vmax.f32 %v753, %v711
    %v759 = vmax.f32 %v754, %v712
    %v760 = vmax.f32 %v755, %v713
    %v761 = vmax.f32 %v756, %v714
    %v762 = vmax.f32 %v757, %v715
    %v763 = vmax.f32 %v758, %v716
    %v764 = vmax.f32 %v759, %v717
    %v765 = vmax.f32 %v760, %v718
    %v766 = vmax.f32 %v761, %v719
    %v767 = vmax.f32 %v762, %v720
    %v768 = vmax.f32 %v763, %v727
    %v769 = vmax.f32 %v764, %v728
    %v770 = vmax.f32 %v765, %v729
    %v771 = vmax.f32 %v766, %v730
    %v772 = vmax.f32 %v767, %v731
    %v773 = vmax.f32 %v768, %v733
    %v774 = vmax.f32 %v769, %v734
    %v775 = vmax.f32 %v770, %v735
    %v776 = vmax.f32 %v771, %v736
    %v777 = vmax.f32 %v772, %v737
    %v781 = vrot.slane %v775, 6
    %v782 = vrot.slane %v776, 6
    %v783 = vsel %vm46, %v781, %v782
    %v784 = vrot.slane %v777, 6
    %v785 = vsel %vm46, %v782, %v784
    %v790 = vrot.slane %v773, 2
    %v791 = vrot.slane %v774, 2
    %v792 = vsel %vm56, %v790, %v791
    %v793 = vrot.slane %v775, 2
    %v794 = vsel %vm56, %v791, %v793
    %v799 = vsel %vm56, %v785, %v790
    %v800 = vsel %vm92, %v783, 0.0
    %v801 = vsel %vm93, %v799, 0.0
    %v802 = vsel %vm94, %v792, 0.0
    %v803 = vsel %vm95, %v794, 0.0
    %v804 = vsel %vm96, %v793, 0.0
    %v805 = vrot.slane %v773, 4
    %v806 = vrot.slane %v774, 4
    %v807 = vsel %vm102, %v805, %v806
    %v808 = vrot.slane %v775, 4
    %v809 = vsel %vm102, %v806, %v808
    %v814 = vsel %vm102, %v777, %v805
    %v815 = vsel %vm133, %v776, 0.0
    %v816 = vsel %vm134, %v814, 0.0
    %v817 = vsel %vm135, %v807, 0.0
    %v818 = vsel %vm136, %v809, 0.0
    %v819 = vsel %vm137, %v808, 0.0
    %v820 = vrot.slane %v776, 2
    %v821 = vrot.slane %v777, 2
    %v822 = vsel %vm56, %v820, %v821
    %v825 = vrot.slane %v773, 6
    %v826 = vrot.slane %v774, 6
    %v827 = vsel %vm46, %v825, %v826
    %v828 = vsel %vm46, %v826, %v781
    %v832 = vsel %vm46, %v821, %v825
    %v833 = vsel %vm176, %v822, 0.0
    %v834 = vsel %vm177, %v832, 0.0
    %v835 = vsel %vm178, %v827, 0.0
    %v836 = vsel %vm179, %v828, 0.0
    %v837 = vsel %vm180, %v783, 0.0
    %v838 = vsel %vm206, %v832, 0.0
    %v839 = vsel %vm207, %v827, 0.0
    %v840 = vsel %vm208, %v828, 0.0
    %v841 = vsel %vm209, %v783, 0.0
    %v842 = vsel %vm210, %v785, 0.0
    %v843 = vsel %vm236, %v773, 0.0
    %v844 = vsel %vm237, %v774, 0.0
    %v845 = vsel %vm238, %v775, 0.0
    %v846 = vsel %vm239, %v776, 0.0
    %v847 = vsel %vm240, %v777, 0.0
    %v848 = vsel %vm56, %v793, %v820
    %v850 = vsel %vm268, %v792, 0.0
    %v851 = vsel %vm269, %v794, 0.0
    %v852 = vsel %vm270, %v848, 0.0
    %v853 = vsel %vm271, %v822, 0.0
    %v854 = vsel %vm272, %v832, 0.0
    %v855 = vsel %vm298, %v794, 0.0
    %v856 = vsel %vm299, %v848, 0.0
    %v857 = vsel %vm300, %v822, 0.0
    %v858 = vsel %vm301, %v832, 0.0
    %v859 = vsel %vm302, %v827, 0.0
    %v860 = vrot.slane %v776, 4
    %v861 = vsel %vm102, %v808, %v860
    %v862 = vrot.slane %v777, 4
    %v863 = vsel %vm102, %v860, %v862
    %v866 = vsel %vm334, %v809, 0.0
    %v867 = vsel %vm335, %v861, 0.0
    %v868 = vsel %vm336, %v863, 0.0
    %v869 = vsel %vm337, %v773, 0.0
    %v870 = vsel %vm338, %v774, 0.0
    %v872 = vsel %vm365, %v828, 0.0
    %v873 = vsel %vm366, %v783, 0.0
    %v874 = vsel %vm367, %v799, 0.0
    %v875 = vsel %vm368, %v792, 0.0
    %v876 = vsel %vm369, %v791, 0.0
    %882 = vrot.lane.b32.xlu0 %v815, 32
    %v883 = vpop.permute.xlu0 %882
    %884 = vrot.lane.b32.xlu0 %v816, 32
    %v885 = vpop.permute.xlu0 %884
    %886 = vrot.lane.b32.xlu0 %v817, 32
    %v887 = vpop.permute.xlu0 %886
    %888 = vrot.lane.b32.xlu0 %v818, 32
    %v889 = vpop.permute.xlu0 %888
    %890 = vrot.lane.b32.xlu0 %v819, 32
    %v891 = vpop.permute.xlu0 %890
    %902 = vrot.lane.b32.xlu0 %v833, 64
    %v903 = vpop.permute.xlu0 %902
    %904 = vrot.lane.b32.xlu0 %v834, 64
    %v905 = vpop.permute.xlu0 %904
    %906 = vrot.lane.b32.xlu0 %v835, 64
    %v907 = vpop.permute.xlu0 %906
    %908 = vrot.lane.b32.xlu0 %v836, 64
    %v909 = vpop.permute.xlu0 %908
    %910 = vrot.lane.b32.xlu0 %v837, 64
    %v911 = vpop.permute.xlu0 %910
    %922 = vrot.lane.b32.xlu0 %v838, 96
    %v923 = vpop.permute.xlu0 %922
    %924 = vrot.lane.b32.xlu0 %v839, 96
    %v925 = vpop.permute.xlu0 %924
    %926 = vrot.lane.b32.xlu0 %v840, 96
    %v927 = vpop.permute.xlu0 %926
    %928 = vrot.lane.b32.xlu0 %v841, 96
    %v929 = vpop.permute.xlu0 %928
    %930 = vrot.lane.b32.xlu0 %v842, 96
    %v931 = vpop.permute.xlu0 %930
    %942 = vrot.lane.b32.xlu0 %v850, 32
    %v943 = vpop.permute.xlu0 %942
    %944 = vrot.lane.b32.xlu0 %v851, 32
    %v945 = vpop.permute.xlu0 %944
    %946 = vrot.lane.b32.xlu0 %v852, 32
    %v947 = vpop.permute.xlu0 %946
    %948 = vrot.lane.b32.xlu0 %v853, 32
    %v949 = vpop.permute.xlu0 %948
    %950 = vrot.lane.b32.xlu0 %v854, 32
    %v951 = vpop.permute.xlu0 %950
    %962 = vrot.lane.b32.xlu0 %v855, 64
    %v963 = vpop.permute.xlu0 %962
    %964 = vrot.lane.b32.xlu0 %v856, 64
    %v965 = vpop.permute.xlu0 %964
    %966 = vrot.lane.b32.xlu0 %v857, 64
    %v967 = vpop.permute.xlu0 %966
    %968 = vrot.lane.b32.xlu0 %v858, 64
    %v969 = vpop.permute.xlu0 %968
    %970 = vrot.lane.b32.xlu0 %v859, 64
    %v971 = vpop.permute.xlu0 %970
    %982 = vrot.lane.b32.xlu0 %v866, 96
    %v983 = vpop.permute.xlu0 %982
    %984 = vrot.lane.b32.xlu0 %v867, 96
    %v985 = vpop.permute.xlu0 %984
    %986 = vrot.lane.b32.xlu0 %v868, 96
    %v987 = vpop.permute.xlu0 %986
    %988 = vrot.lane.b32.xlu0 %v869, 96
    %v989 = vpop.permute.xlu0 %988
    %990 = vrot.lane.b32.xlu0 %v870, 96
    %v991 = vpop.permute.xlu0 %990
    %vm997 = vcmask 261120
    %v998 = vsel %vm997, %v800, %v883
    %v999 = vsel %vm997, %v801, %v885
    %v1000 = vsel %vm997, %v802, %v887
    %v1001 = vsel %vm997, %v803, %v889
    %v1002 = vsel %vm997, %v804, %v891
    %vm1003 = vcmask 523264
    %v1004 = vsel %vm1003, %v998, %v903
    %v1005 = vsel %vm1003, %v999, %v905
    %v1006 = vsel %vm1003, %v1000, %v907
    %v1007 = vsel %vm1003, %v1001, %v909
    %v1008 = vsel %vm1003, %v1002, %v911
    %vm1009 = vcmask 785408
    %v1010 = vsel %vm1009, %v1004, %v923
    %v1011 = vsel %vm1009, %v1005, %v925
    %v1012 = vsel %vm1009, %v1006, %v927
    %v1013 = vsel %vm1009, %v1007, %v929
    %v1014 = vsel %vm1009, %v1008, %v931
    %v1015 = vsel %vm997, %v843, %v943
    %v1016 = vsel %vm997, %v844, %v945
    %v1017 = vsel %vm997, %v845, %v947
    %v1018 = vsel %vm997, %v846, %v949
    %v1019 = vsel %vm997, %v847, %v951
    %v1020 = vsel %vm1003, %v1015, %v963
    %v1021 = vsel %vm1003, %v1016, %v965
    %v1022 = vsel %vm1003, %v1017, %v967
    %v1023 = vsel %vm1003, %v1018, %v969
    %v1024 = vsel %vm1003, %v1019, %v971
    %v1025 = vsel %vm1009, %v1020, %v983
    %v1026 = vsel %vm1009, %v1021, %v985
    %v1027 = vsel %vm1009, %v1022, %v987
    %v1028 = vsel %vm1009, %v1023, %v989
    %v1029 = vsel %vm1009, %v1024, %v991
    %v1030 = vpack.c.bf16 %v1011, %v1010
    %v1031 = vpack.c.bf16 %v1026, %v1025
    %v1032 = vpack.c.bf16 %v873, %v872
    %v1033 = vpack.c.bf16 %v1013, %v1012
    %v1034 = vpack.c.bf16 %v1028, %v1027
    %v1035 = vpack.c.bf16 %v875, %v874
    %v1036 = vpack.c.bf16 %v1014, %v1014
    %v1037 = vpack.c.bf16 %v1029, %v1029
    %v1038 = vpack.c.bf16 %v876, %v876
    %v1039 = vld [vmem:[%s4] sm:$0xf]
    %v1040 = vld [vmem:[%s4 + $0x4] sm:$0xf]
    %v1041 = vld [vmem:[%s4 + $0x8] sm:$0xf]
    %v1042 = vld [vmem:[%s4 + $0xc] sm:$0xf]
    %v1043 = vld [vmem:[%s4 + $0x10] sm:$0xf]
    %v1044 = vld [vmem:[%s4 + $0x14] sm:$0xf]
    %v1045 = vld [vmem:[%s4 + $0x18] sm:$0xf]
    %v1046 = vld [vmem:[%s4 + $0x1c] sm:$0xf]
    %v1047 = vld [vmem:[%s4 + $0x20] sm:$0xf]
    %v1048 = vld [vmem:[%s4 + $0x24] sm:$0xf]
    %v1049 = vld [vmem:[%s4 + $0x28] sm:$0xf]
    %v1050 = vld [vmem:[%s4 + $0x2c] sm:$0xf]
    %v1051 = vld [vmem:[%s4 + $0x30] sm:$0xf]
    %v1052 = vld [vmem:[%s4 + $0x34] sm:$0xf]
    %v1053 = vld [vmem:[%s4 + $0x38] sm:$0xf]
    %v1054 = vld [vmem:[%s4 + $0x3c] sm:$0xf]
    %v1055 = vld [vmem:[%s4 + $0x40] sm:$0xf]
    %v1056 = vld [vmem:[%s4 + $0x44] sm:$0xf]
    %v1057 = vld [vmem:[%s4 + $0x48] sm:$0xf]
    %v1058 = vld [vmem:[%s4 + $0x4c] sm:$0xf]
    %v1059 = vld [vmem:[%s4 + $0x50] sm:$0xf]
    %v1060 = vld [vmem:[%s4 + $0x54] sm:$0xf]
    %v1061 = vld [vmem:[%s4 + $0x58] sm:$0xf]
    %v1062 = vld [vmem:[%s4 + $0x5c] sm:$0xf]
    %v1063 = vld [vmem:[%s4 + $0x60] sm:$0xf]
    %v1064 = vld [vmem:[%s4 + $0x64] sm:$0xf]
    %v1065 = vld [vmem:[%s4 + $0x68] sm:$0xf]
    %v1066 = vld [vmem:[%s4 + $0x6c] sm:$0xf]
    %v1067 = vld [vmem:[%s4 + $0x70] sm:$0xf]
    %v1068 = vld [vmem:[%s4 + $0x74] sm:$0xf]
    %v1069 = vld [vmem:[%s4 + $0x78] sm:$0xf]
    %v1070 = vld [vmem:[%s4 + $0x7c] sm:$0xf]
    %v1071 = vld [vmem:[%s4 + $0x80] sm:$0xf]
    %v1072 = vld [vmem:[%s4 + $0x84] sm:$0xf]
    %v1073 = vld [vmem:[%s4 + $0x88] sm:$0xf]
    %v1074 = vld [vmem:[%s4 + $0x8c] sm:$0xf]
    %v1075 = vld [vmem:[%s5] sm:$0x1]
    %v1077 = vperm.slane %v1075, 0
    %v1115 = vunpack.c.l.b16 %v1039
    %v1116 = vunpack.c.l.b16 %v1040
    %v1117 = vunpack.c.l.b16 %v1041
    %v1118 = vunpack.c.l.b16 %v1042
    %v1119 = vunpack.c.l.b16 %v1043
    %v1120 = vunpack.c.l.b16 %v1044
    %v1121 = vunpack.c.l.b16 %v1045
    %v1122 = vunpack.c.l.b16 %v1046
    %v1123 = vunpack.c.l.b16 %v1047
    %v1124 = vunpack.c.l.b16 %v1048
    %v1125 = vunpack.c.l.b16 %v1049
    %v1126 = vunpack.c.l.b16 %v1050
    %v1127 = vunpack.c.l.b16 %v1051
    %v1128 = vunpack.c.l.b16 %v1052
    %v1129 = vunpack.c.l.b16 %v1053
    %v1130 = vunpack.c.l.b16 %v1054
    %v1131 = vunpack.c.l.b16 %v1055
    %v1132 = vunpack.c.l.b16 %v1056
    %v1133 = vunpack.c.l.b16 %v1057
    %v1134 = vunpack.c.l.b16 %v1058
    %v1135 = vunpack.c.l.b16 %v1059
    %v1136 = vunpack.c.l.b16 %v1060
    %v1137 = vunpack.c.l.b16 %v1061
    %v1138 = vunpack.c.l.b16 %v1062
    %v1139 = vunpack.c.l.b16 %v1063
    %v1140 = vunpack.c.l.b16 %v1064
    %v1141 = vunpack.c.l.b16 %v1065
    %v1142 = vunpack.c.l.b16 %v1066
    %v1143 = vunpack.c.l.b16 %v1067
    %v1144 = vunpack.c.l.b16 %v1068
    %v1145 = vunpack.c.l.b16 %v1069
    %v1146 = vunpack.c.l.b16 %v1070
    %v1147 = vunpack.c.l.b16 %v1071
    %v1148 = vunpack.c.l.b16 %v1072
    %v1149 = vunpack.c.l.b16 %v1073
    %v1150 = vunpack.c.l.b16 %v1074
    %v1151 = vpack.c.b16 %v1116, %v1115
    %v1152 = vpack.c.b16 %v1118, %v1117
    %v1153 = vpack.c.b16 %v1120, %v1119
    %v1154 = vpack.c.b16 %v1122, %v1121
    %v1155 = vpack.c.b16 %v1124, %v1123
    %v1156 = vpack.c.b16 %v1126, %v1125
    %v1157 = vpack.c.b16 %v1128, %v1127
    %v1158 = vpack.c.b16 %v1130, %v1129
    %v1159 = vpack.c.b16 %v1132, %v1131
    %v1160 = vpack.c.b16 %v1134, %v1133
    %v1161 = vpack.c.b16 %v1136, %v1135
    %v1162 = vpack.c.b16 %v1138, %v1137
    %v1163 = vpack.c.b16 %v1140, %v1139
    %v1164 = vpack.c.b16 %v1142, %v1141
    %v1165 = vpack.c.b16 %v1144, %v1143
    %v1166 = vpack.c.b16 %v1146, %v1145
    %v1167 = vpack.c.b16 %v1148, %v1147
    %v1168 = vpack.c.b16 %v1150, %v1149
    %v1188 = vsel %vm997, %v1032, 0
    %v1191 = vsel %vm997, %v1035, 0
    %v1194 = vsel %vm997, %v1038, 0
    %1196 = vmatpush.bf16.msra.mxu0 %v1158
    %1197 = vmatpush.bf16.msra.mxu0 %v1157
    %1198 = vmatpush.bf16.msra.mxu0 %v1156
    %1199 = vmatpush.bf16.msra.mxu0 %v1155
    %1200 = vmatpush.bf16.msra.mxu0 %v1154
    %1201 = vmatpush.bf16.msra.mxu0 %v1153
    %1202 = vmatpush.bf16.msra.mxu0 %v1152
    %1203 = vmatpush.bf16.msra.mxu0 %v1151
    %1204 = vmatmul.bf16.gmra.mxu0 %v1030
    %v1205 = vpop.f32.mrf.mxu0
    %v1206 = vadd.f32 %v1077, %v1205
    %v1207 = vpop.f32.mrf.mxu0
    %v1208 = vadd.f32 %v1077, %v1207
    %1209 = vmatmul.bf16.gmra.mxu0 %v1033
    %v1210 = vpop.f32.mrf.mxu0
    %v1211 = vadd.f32 %v1077, %v1210
    %v1212 = vpop.f32.mrf.mxu0
    %v1213 = vadd.f32 %v1077, %v1212
    %1214 = vmatmul.bf16.gmra.mxu0 %v1036
    %v1215 = vpop.f32.mrf.mxu0
    %v1216 = vadd.f32 %v1077, %v1215
    %v1217 = vpop.f32.mrf.mxu0
    %1218 = vdwg.mxu0
    %1219 = vmatpush.bf16.msra.mxu0 %v1166
    %1220 = vmatpush.bf16.msra.mxu0 %v1165
    %1221 = vmatpush.bf16.msra.mxu0 %v1164
    %1222 = vmatpush.bf16.msra.mxu0 %v1163
    %1223 = vmatpush.bf16.msra.mxu0 %v1162
    %1224 = vmatpush.bf16.msra.mxu0 %v1161
    %1225 = vmatpush.bf16.msra.mxu0 %v1160
    %1226 = vmatpush.bf16.msra.mxu0 %v1159
    %1227 = vmatmul.bf16.gmra.mxu0 %v1031
    %v1228 = vpop.f32.mrf.mxu0
    %v1229 = vadd.f32 %v1206, %v1228
    %v1230 = vpop.f32.mrf.mxu0
    %v1231 = vadd.f32 %v1208, %v1230
    %1232 = vmatmul.bf16.gmra.mxu0 %v1034
    %v1233 = vpop.f32.mrf.mxu0
    %v1234 = vadd.f32 %v1211, %v1233
    %v1235 = vpop.f32.mrf.mxu0
    %v1236 = vadd.f32 %v1213, %v1235
    %1237 = vmatmul.bf16.gmra.mxu0 %v1037
    %v1238 = vpop.f32.mrf.mxu0
    %v1239 = vadd.f32 %v1216, %v1238
    %v1240 = vpop.f32.mrf.mxu0
    %1241 = vdwg.mxu0
    %1242 = vmatpush.bf16.msra.mxu0 0
    %1243 = vmatpush.bf16.msra.mxu0 0
    %1244 = vmatpush.bf16.msra.mxu0 0
    %1245 = vmatpush.bf16.msra.mxu0 0
    %1246 = vmatpush.bf16.msra.mxu0 0
    %1247 = vmatpush.bf16.msra.mxu0 0
    %1248 = vmatpush.bf16.msra.mxu0 %v1168
    %1249 = vmatpush.bf16.msra.mxu0 %v1167
    %1250 = vmatmul.bf16.gmra.mxu0 %v1188
    %v1251 = vpop.f32.mrf.mxu0
    %v1252 = vadd.f32 %v1229, %v1251
    %v1253 = vpop.f32.mrf.mxu0
    %v1254 = vadd.f32 %v1231, %v1253
    %1255 = vmatmul.bf16.gmra.mxu0 %v1191
    %v1256 = vpop.f32.mrf.mxu0
    %v1257 = vadd.f32 %v1234, %v1256
    %v1258 = vpop.f32.mrf.mxu0
    %v1259 = vadd.f32 %v1236, %v1258
    %1260 = vmatmul.bf16.gmra.mxu0 %v1194
    %v1261 = vpop.f32.mrf.mxu0
    %v1262 = vadd.f32 %v1239, %v1261
    %v1263 = vpop.f32.mrf.mxu0
    %1264 = vdwg.mxu0
    %v1268 = vrot.slane %v1257, 6
    %v1269 = vrot.slane %v1259, 6
    %v1270 = vsel %vm46, %v1268, %v1269
    %v1271 = vrot.slane %v1262, 6
    %v1272 = vsel %vm46, %v1269, %v1271
    %v1277 = vrot.slane %v1252, 2
    %v1278 = vrot.slane %v1254, 2
    %v1279 = vsel %vm56, %v1277, %v1278
    %v1280 = vrot.slane %v1257, 2
    %v1281 = vsel %vm56, %v1278, %v1280
    %v1286 = vsel %vm56, %v1272, %v1277
    %v1287 = vsel %vm92, %v1270, -inf
    %v1288 = vsel %vm93, %v1286, -inf
    %v1289 = vsel %vm94, %v1279, -inf
    %v1290 = vsel %vm95, %v1281, -inf
    %v1291 = vsel %vm96, %v1280, -inf
    %v1292 = vrot.slane %v1252, 4
    %v1293 = vrot.slane %v1254, 4
    %v1294 = vsel %vm102, %v1292, %v1293
    %v1295 = vrot.slane %v1257, 4
    %v1296 = vsel %vm102, %v1293, %v1295
    %v1301 = vsel %vm102, %v1262, %v1292
    %v1302 = vsel %vm133, %v1259, -inf
    %v1303 = vsel %vm134, %v1301, -inf
    %v1304 = vsel %vm135, %v1294, -inf
    %v1305 = vsel %vm136, %v1296, -inf
    %v1306 = vsel %vm137, %v1295, -inf
    %v1307 = vrot.slane %v1259, 2
    %v1308 = vrot.slane %v1262, 2
    %v1309 = vsel %vm56, %v1307, %v1308
    %v1312 = vrot.slane %v1252, 6
    %v1313 = vrot.slane %v1254, 6
    %v1314 = vsel %vm46, %v1312, %v1313
    %v1315 = vsel %vm46, %v1313, %v1268
    %v1319 = vsel %vm46, %v1308, %v1312
    %v1320 = vsel %vm176, %v1309, -inf
    %v1321 = vsel %vm177, %v1319, -inf
    %v1322 = vsel %vm178, %v1314, -inf
    %v1323 = vsel %vm179, %v1315, -inf
    %v1324 = vsel %vm180, %v1270, -inf
    %v1325 = vsel %vm206, %v1319, -inf
    %v1326 = vsel %vm207, %v1314, -inf
    %v1327 = vsel %vm208, %v1315, -inf
    %v1328 = vsel %vm209, %v1270, -inf
    %v1329 = vsel %vm210, %v1272, -inf
    %v1330 = vsel %vm236, %v1252, -inf
    %v1331 = vsel %vm237, %v1254, -inf
    %v1332 = vsel %vm238, %v1257, -inf
    %v1333 = vsel %vm239, %v1259, -inf
    %v1334 = vsel %vm240, %v1262, -inf
    %v1335 = vsel %vm56, %v1280, %v1307
    %v1337 = vsel %vm268, %v1279, -inf
    %v1338 = vsel %vm269, %v1281, -inf
    %v1339 = vsel %vm270, %v1335, -inf
    %v1340 = vsel %vm271, %v1309, -inf
    %v1341 = vsel %vm272, %v1319, -inf
    %v1342 = vsel %vm298, %v1281, -inf
    %v1343 = vsel %vm299, %v1335, -inf
    %v1344 = vsel %vm300, %v1309, -inf
    %v1345 = vsel %vm301, %v1319, -inf
    %v1346 = vsel %vm302, %v1314, -inf
    %v1347 = vrot.slane %v1259, 4
    %v1348 = vsel %vm102, %v1295, %v1347
    %v1349 = vrot.slane %v1262, 4
    %v1350 = vsel %vm102, %v1347, %v1349
    %v1353 = vsel %vm334, %v1296, -inf
    %v1354 = vsel %vm335, %v1348, -inf
    %v1355 = vsel %vm336, %v1350, -inf
    %v1356 = vsel %vm337, %v1252, -inf
    %v1357 = vsel %vm338, %v1254, -inf
    %v1359 = vsel %vm365, %v1315, -inf
    %v1360 = vsel %vm366, %v1270, -inf
    %v1361 = vsel %vm367, %v1286, -inf
    %v1362 = vsel %vm368, %v1279, -inf
    %v1363 = vsel %vm369, %v1278, -inf
    %v1364 = vmax.f32 %v1287, %v1302
    %v1365 = vmax.f32 %v1288, %v1303
    %v1366 = vmax.f32 %v1289, %v1304
    %v1367 = vmax.f32 %v1290, %v1305
    %v1368 = vmax.f32 %v1291, %v1306
    %v1369 = vmax.f32 %v1364, %v1320
    %v1370 = vmax.f32 %v1365, %v1321
    %v1371 = vmax.f32 %v1366, %v1322
    %v1372 = vmax.f32 %v1367, %v1323
    %v1373 = vmax.f32 %v1368, %v1324
    %v1374 = vmax.f32 %v1369, %v1325
    %v1375 = vmax.f32 %v1370, %v1326
    %v1376 = vmax.f32 %v1371, %v1327
    %v1377 = vmax.f32 %v1372, %v1328
    %v1378 = vmax.f32 %v1373, %v1329
    %v1379 = vmax.f32 %v1374, %v1330
    %v1380 = vmax.f32 %v1375, %v1331
    %v1381 = vmax.f32 %v1376, %v1332
    %v1382 = vmax.f32 %v1377, %v1333
    %v1383 = vmax.f32 %v1378, %v1334
    %v1384 = vmax.f32 %v1379, %v1337
    %v1385 = vmax.f32 %v1380, %v1338
    %v1386 = vmax.f32 %v1381, %v1339
    %v1387 = vmax.f32 %v1382, %v1340
    %v1388 = vmax.f32 %v1383, %v1341
    %v1389 = vmax.f32 %v1384, %v1342
    %v1390 = vmax.f32 %v1385, %v1343
    %v1391 = vmax.f32 %v1386, %v1344
    %v1392 = vmax.f32 %v1387, %v1345
    %v1393 = vmax.f32 %v1388, %v1346
    %v1394 = vmax.f32 %v1389, %v1353
    %v1395 = vmax.f32 %v1390, %v1354
    %v1396 = vmax.f32 %v1391, %v1355
    %v1397 = vmax.f32 %v1392, %v1356
    %v1398 = vmax.f32 %v1393, %v1357
    %v1399 = vmax.f32 %v1394, %v1359
    %v1400 = vmax.f32 %v1395, %v1360
    %v1401 = vmax.f32 %v1396, %v1361
    %v1402 = vmax.f32 %v1397, %v1362
    %v1403 = vmax.f32 %v1398, %v1363
    %vm1404 = vcmp.gt.f32.partialorder %v1399, 0.0
    %vm1405 = vcmp.gt.f32.partialorder %v1400, 0.0
    %vm1406 = vcmp.gt.f32.partialorder %v1401, 0.0
    %vm1407 = vcmp.gt.f32.partialorder %v1402, 0.0
    %vm1408 = vcmp.gt.f32.partialorder %v1403, 0.0
    %v1409 = vmul.f32 %v1399, 0.01
    %v1410 = vmul.f32 %v1400, 0.01
    %v1411 = vmul.f32 %v1401, 0.01
    %v1412 = vmul.f32 %v1402, 0.01
    %v1413 = vmul.f32 %v1403, 0.01
    %v1414 = vsel %vm1404, %v1399, %v1409
    %v1415 = vsel %vm1405, %v1400, %v1410
    %v1416 = vsel %vm1406, %v1401, %v1411
    %v1417 = vsel %vm1407, %v1402, %v1412
    %v1418 = vsel %vm1408, %v1403, %v1413
    %v1420 = vrot.slane %v1414, 2
    %1421 = vrot.lane.b32.xlu0 %v1420, 64
    %v1422 = vpop.permute.xlu0 %1421
    %v1424 = vrot.slane %v1414, 4
    %v1426 = vrot.slane %v1414, 6
    %1427 = vrot.lane.b32.xlu0 %v1426, 64
    %v1428 = vpop.permute.xlu0 %1427
    %v1431 = vrot.slane %v1415, 2
    %1432 = vrot.lane.b32.xlu0 %v1431, 64
    %v1433 = vpop.permute.xlu0 %1432
    %v1435 = vrot.slane %v1415, 4
    %v1437 = vrot.slane %v1415, 6
    %1438 = vrot.lane.b32.xlu0 %v1437, 64
    %v1439 = vpop.permute.xlu0 %1438
    %v1442 = vrot.slane %v1416, 2
    %1443 = vrot.lane.b32.xlu0 %v1442, 64
    %v1444 = vpop.permute.xlu0 %1443
    %v1446 = vrot.slane %v1416, 4
    %v1448 = vrot.slane %v1416, 6
    %1449 = vrot.lane.b32.xlu0 %v1448, 64
    %v1450 = vpop.permute.xlu0 %1449
    %v1453 = vrot.slane %v1417, 2
    %1454 = vrot.lane.b32.xlu0 %v1453, 64
    %v1455 = vpop.permute.xlu0 %1454
    %v1457 = vrot.slane %v1417, 4
    %v1459 = vrot.slane %v1417, 6
    %1460 = vrot.lane.b32.xlu0 %v1459, 64
    %v1461 = vpop.permute.xlu0 %1460
    %v1463 = vsel %vm1003, %v1414, %v1422
    %v1464 = vsel %vm1003, %v1424, %v1428
    %v1465 = vsel %vm1003, %v1415, %v1433
    %v1466 = vsel %vm1003, %v1435, %v1439
    %v1467 = vsel %vm1003, %v1416, %v1444
    %v1468 = vsel %vm1003, %v1446, %v1450
    %v1469 = vsel %vm1003, %v1417, %v1455
    %v1470 = vsel %vm1003, %v1457, %v1461
    %v1472 = vrot.slane %v1418, 2
    %1473 = vrot.lane.b32.xlu0 %v1472, 64
    %v1474 = vpop.permute.xlu0 %1473
    %v1476 = vsel %vm1003, %v1418, %v1474
    %v1477 = vpack.c.bf16 %v1463, %v1463
    %v1478 = vpack.c.bf16 %v1464, %v1464
    %v1479 = vpack.c.bf16 %v1465, %v1465
    %v1480 = vpack.c.bf16 %v1466, %v1466
    %v1481 = vpack.c.bf16 %v1467, %v1467
    %v1482 = vpack.c.bf16 %v1468, %v1468
    %v1483 = vpack.c.bf16 %v1469, %v1469
    %v1484 = vpack.c.bf16 %v1470, %v1470
    %v1485 = vpack.c.bf16 %v1476, %v1476
    %v1486 = vld [vmem:[%s6] sm:$0xf]
    %v1487 = vld [vmem:[%s6 + $0x4] sm:$0xf]
    %v1488 = vld [vmem:[%s6 + $0x8] sm:$0xf]
    %v1489 = vld [vmem:[%s6 + $0xc] sm:$0xf]
    %v1490 = vld [vmem:[%s6 + $0x10] sm:$0xf]
    %v1491 = vld [vmem:[%s6 + $0x14] sm:$0xf]
    %v1492 = vld [vmem:[%s6 + $0x18] sm:$0xf]
    %v1493 = vld [vmem:[%s6 + $0x1c] sm:$0xf]
    %v1494 = vld [vmem:[%s6 + $0x20] sm:$0xf]
    %v1495 = vld [vmem:[%s6 + $0x24] sm:$0xf]
    %v1496 = vld [vmem:[%s6 + $0x28] sm:$0xf]
    %v1497 = vld [vmem:[%s6 + $0x2c] sm:$0xf]
    %v1498 = vld [vmem:[%s6 + $0x30] sm:$0xf]
    %v1499 = vld [vmem:[%s6 + $0x34] sm:$0xf]
    %v1500 = vld [vmem:[%s6 + $0x38] sm:$0xf]
    %v1501 = vld [vmem:[%s6 + $0x3c] sm:$0xf]
    %v1502 = vld [vmem:[%s6 + $0x40] sm:$0xf]
    %v1503 = vld [vmem:[%s6 + $0x44] sm:$0xf]
    %v1504 = vld [vmem:[%s6 + $0x48] sm:$0xf]
    %v1505 = vld [vmem:[%s6 + $0x4c] sm:$0xf]
    %v1506 = vld [vmem:[%s6 + $0x50] sm:$0xf]
    %v1507 = vld [vmem:[%s6 + $0x54] sm:$0xf]
    %v1508 = vld [vmem:[%s6 + $0x58] sm:$0xf]
    %v1509 = vld [vmem:[%s6 + $0x5c] sm:$0xf]
    %v1510 = vld [vmem:[%s6 + $0x60] sm:$0xf]
    %v1511 = vld [vmem:[%s6 + $0x64] sm:$0xf]
    %v1512 = vld [vmem:[%s6 + $0x68] sm:$0xf]
    %v1513 = vld [vmem:[%s6 + $0x6c] sm:$0xf]
    %v1514 = vld [vmem:[%s6 + $0x70] sm:$0xf]
    %v1515 = vld [vmem:[%s6 + $0x74] sm:$0xf]
    %v1516 = vld [vmem:[%s6 + $0x78] sm:$0xf]
    %v1517 = vld [vmem:[%s6 + $0x7c] sm:$0xf]
    %v1518 = vld [vmem:[%s6 + $0x80] sm:$0xf]
    %v1519 = vld [vmem:[%s6 + $0x84] sm:$0xf]
    %v1520 = vld [vmem:[%s6 + $0x88] sm:$0xf]
    %v1521 = vld [vmem:[%s6 + $0x8c] sm:$0xf]
    %v1522 = vld [vmem:[%s6 + $0x90] sm:$0xf]
    %v1523 = vld [vmem:[%s6 + $0x94] sm:$0xf]
    %v1524 = vld [vmem:[%s6 + $0x98] sm:$0xf]
    %v1525 = vld [vmem:[%s6 + $0x9c] sm:$0xf]
    %v1526 = vld [vmem:[%s6 + $0xa0] sm:$0xf]
    %v1527 = vld [vmem:[%s6 + $0xa4] sm:$0xf]
    %v1528 = vld [vmem:[%s6 + $0xa8] sm:$0xf]
    %v1529 = vld [vmem:[%s6 + $0xac] sm:$0xf]
    %v1530 = vld [vmem:[%s6 + $0xb0] sm:$0xf]
    %v1531 = vld [vmem:[%s6 + $0xb4] sm:$0xf]
    %v1532 = vld [vmem:[%s6 + $0xb8] sm:$0xf]
    %v1533 = vld [vmem:[%s6 + $0xbc] sm:$0xf]
    %v1534 = vld [vmem:[%s6 + $0xc0] sm:$0xf]
    %v1535 = vld [vmem:[%s6 + $0xc4] sm:$0xf]
    %v1536 = vld [vmem:[%s6 + $0xc8] sm:$0xf]
    %v1537 = vld [vmem:[%s6 + $0xcc] sm:$0xf]
    %v1538 = vld [vmem:[%s6 + $0xd0] sm:$0xf]
    %v1539 = vld [vmem:[%s6 + $0xd4] sm:$0xf]
    %v1540 = vld [vmem:[%s6 + $0xd8] sm:$0xf]
    %v1541 = vld [vmem:[%s6 + $0xdc] sm:$0xf]
    %v1542 = vld [vmem:[%s6 + $0xe0] sm:$0xf]
    %v1543 = vld [vmem:[%s6 + $0xe4] sm:$0xf]
    %v1544 = vld [vmem:[%s6 + $0xe8] sm:$0xf]
    %v1545 = vld [vmem:[%s6 + $0xec] sm:$0xf]
    %v1546 = vld [vmem:[%s6 + $0xf0] sm:$0xf]
    %v1547 = vld [vmem:[%s6 + $0xf4] sm:$0xf]
    %v1548 = vld [vmem:[%s6 + $0xf8] sm:$0xf]
    %v1549 = vld [vmem:[%s6 + $0xfc] sm:$0xf]
    %v1550 = vld [vmem:[%s6 + $0x100] sm:$0xf]
    %v1551 = vld [vmem:[%s6 + $0x104] sm:$0xf]
    %v1552 = vld [vmem:[%s6 + $0x108] sm:$0xf]
    %v1553 = vld [vmem:[%s6 + $0x10c] sm:$0xf]
    %v1554 = vld [vmem:[%s6 + $0x110] sm:$0xf]
    %v1555 = vld [vmem:[%s6 + $0x114] sm:$0xf]
    %v1556 = vld [vmem:[%s6 + $0x118] sm:$0xf]
    %v1557 = vld [vmem:[%s6 + $0x11c] sm:$0xf]
    %v1558 = vld [vmem:[%s6 + $0x120] sm:$0xf]
    %v1559 = vld [vmem:[%s6 + $0x124] sm:$0xf]
    %v1560 = vld [vmem:[%s6 + $0x128] sm:$0xf]
    %v1561 = vld [vmem:[%s6 + $0x12c] sm:$0xf]
    %v1562 = vld [vmem:[%s6 + $0x130] sm:$0xf]
    %v1563 = vld [vmem:[%s6 + $0x134] sm:$0xf]
    %v1564 = vld [vmem:[%s6 + $0x138] sm:$0xf]
    %v1565 = vld [vmem:[%s6 + $0x13c] sm:$0xf]
    %v1566 = vld [vmem:[%s6 + $0x140] sm:$0xf]
    %v1567 = vld [vmem:[%s6 + $0x144] sm:$0xf]
    %v1568 = vld [vmem:[%s6 + $0x148] sm:$0xf]
    %v1569 = vld [vmem:[%s6 + $0x14c] sm:$0xf]
    %v1570 = vld [vmem:[%s6 + $0x150] sm:$0xf]
    %v1571 = vld [vmem:[%s6 + $0x154] sm:$0xf]
    %v1572 = vld [vmem:[%s6 + $0x158] sm:$0xf]
    %v1573 = vld [vmem:[%s6 + $0x15c] sm:$0xf]
    %v1574 = vld [vmem:[%s6 + $0x160] sm:$0xf]
    %v1575 = vld [vmem:[%s6 + $0x164] sm:$0xf]
    %v1576 = vld [vmem:[%s6 + $0x168] sm:$0xf]
    %v1577 = vld [vmem:[%s6 + $0x16c] sm:$0xf]
    %v1578 = vld [vmem:[%s6 + $0x170] sm:$0xf]
    %v1579 = vld [vmem:[%s6 + $0x174] sm:$0xf]
    %v1580 = vld [vmem:[%s6 + $0x178] sm:$0xf]
    %v1581 = vld [vmem:[%s6 + $0x17c] sm:$0xf]
    %v1582 = vld [vmem:[%s6 + $0x180] sm:$0xf]
    %v1583 = vld [vmem:[%s6 + $0x184] sm:$0xf]
    %v1584 = vld [vmem:[%s6 + $0x188] sm:$0xf]
    %v1585 = vld [vmem:[%s6 + $0x18c] sm:$0xf]
    %v1586 = vld [vmem:[%s6 + $0x190] sm:$0xf]
    %v1587 = vld [vmem:[%s6 + $0x194] sm:$0xf]
    %v1588 = vld [vmem:[%s6 + $0x198] sm:$0xf]
    %v1589 = vld [vmem:[%s6 + $0x19c] sm:$0xf]
    %v1590 = vld [vmem:[%s6 + $0x1a0] sm:$0xf]
    %v1591 = vld [vmem:[%s6 + $0x1a4] sm:$0xf]
    %v1592 = vld [vmem:[%s6 + $0x1a8] sm:$0xf]
    %v1593 = vld [vmem:[%s6 + $0x1ac] sm:$0xf]
    %v1594 = vld [vmem:[%s6 + $0x1b0] sm:$0xf]
    %v1595 = vld [vmem:[%s6 + $0x1b4] sm:$0xf]
    %v1596 = vld [vmem:[%s6 + $0x1b8] sm:$0xf]
    %v1597 = vld [vmem:[%s6 + $0x1bc] sm:$0xf]
    %v1598 = vld [vmem:[%s6 + $0x1c0] sm:$0xf]
    %v1599 = vld [vmem:[%s6 + $0x1c4] sm:$0xf]
    %v1600 = vld [vmem:[%s6 + $0x1c8] sm:$0xf]
    %v1601 = vld [vmem:[%s6 + $0x1cc] sm:$0xf]
    %v1602 = vld [vmem:[%s6 + $0x1d0] sm:$0xf]
    %v1603 = vld [vmem:[%s6 + $0x1d4] sm:$0xf]
    %v1604 = vld [vmem:[%s6 + $0x1d8] sm:$0xf]
    %v1605 = vld [vmem:[%s6 + $0x1dc] sm:$0xf]
    %v1606 = vld [vmem:[%s6 + $0x1e0] sm:$0xf]
    %v1607 = vld [vmem:[%s6 + $0x1e4] sm:$0xf]
    %v1608 = vld [vmem:[%s6 + $0x1e8] sm:$0xf]
    %v1609 = vld [vmem:[%s6 + $0x1ec] sm:$0xf]
    %v1610 = vld [vmem:[%s6 + $0x1f0] sm:$0xf]
    %v1611 = vld [vmem:[%s6 + $0x1f4] sm:$0xf]
    %v1612 = vld [vmem:[%s6 + $0x1f8] sm:$0xf]
    %v1613 = vld [vmem:[%s6 + $0x1fc] sm:$0xf]
    %v1614 = vld [vmem:[%s6 + $0x200] sm:$0xf]
    %v1615 = vld [vmem:[%s6 + $0x204] sm:$0xf]
    %v1616 = vld [vmem:[%s6 + $0x208] sm:$0xf]
    %v1617 = vld [vmem:[%s6 + $0x20c] sm:$0xf]
    %v1618 = vld [vmem:[%s6 + $0x210] sm:$0xf]
    %v1619 = vld [vmem:[%s6 + $0x214] sm:$0xf]
    %v1620 = vld [vmem:[%s6 + $0x218] sm:$0xf]
    %v1621 = vld [vmem:[%s6 + $0x21c] sm:$0xf]
    %v1622 = vld [vmem:[%s6 + $0x220] sm:$0xf]
    %v1623 = vld [vmem:[%s6 + $0x224] sm:$0xf]
    %v1624 = vld [vmem:[%s6 + $0x228] sm:$0xf]
    %v1625 = vld [vmem:[%s6 + $0x22c] sm:$0xf]
    %v1626 = vld [vmem:[%s6 + $0x230] sm:$0xf]
    %v1627 = vld [vmem:[%s6 + $0x234] sm:$0xf]
    %v1628 = vld [vmem:[%s6 + $0x238] sm:$0xf]
    %v1629 = vld [vmem:[%s6 + $0x23c] sm:$0xf]
    %v1630 = vld [vmem:[%s7] sm:$0x1]
    %v1632 = vperm.slane %v1630, 0
    %v1778 = vunpack.c.l.b16 %v1486
    %v1779 = vunpack.c.l.b16 %v1487
    %v1780 = vunpack.c.l.b16 %v1488
    %v1781 = vunpack.c.l.b16 %v1489
    %v1782 = vunpack.c.l.b16 %v1490
    %v1783 = vunpack.c.l.b16 %v1491
    %v1784 = vunpack.c.l.b16 %v1492
    %v1785 = vunpack.c.l.b16 %v1493
    %v1786 = vunpack.c.l.b16 %v1494
    %v1787 = vunpack.c.l.b16 %v1495
    %v1788 = vunpack.c.l.b16 %v1496
    %v1789 = vunpack.c.l.b16 %v1497
    %v1790 = vunpack.c.l.b16 %v1498
    %v1791 = vunpack.c.l.b16 %v1499
    %v1792 = vunpack.c.l.b16 %v1500
    %v1793 = vunpack.c.l.b16 %v1501
    %v1794 = vunpack.c.l.b16 %v1502
    %v1795 = vunpack.c.l.b16 %v1503
    %v1796 = vunpack.c.l.b16 %v1504
    %v1797 = vunpack.c.l.b16 %v1505
    %v1798 = vunpack.c.l.b16 %v1506
    %v1799 = vunpack.c.l.b16 %v1507
    %v1800 = vunpack.c.l.b16 %v1508
    %v1801 = vunpack.c.l.b16 %v1509
    %v1802 = vunpack.c.l.b16 %v1510
    %v1803 = vunpack.c.l.b16 %v1511
    %v1804 = vunpack.c.l.b16 %v1512
    %v1805 = vunpack.c.l.b16 %v1513
    %v1806 = vunpack.c.l.b16 %v1514
    %v1807 = vunpack.c.l.b16 %v1515
    %v1808 = vunpack.c.l.b16 %v1516
    %v1809 = vunpack.c.l.b16 %v1517
    %v1810 = vunpack.c.l.b16 %v1518
    %v1811 = vunpack.c.l.b16 %v1519
    %v1812 = vunpack.c.l.b16 %v1520
    %v1813 = vunpack.c.l.b16 %v1521
    %v1814 = vunpack.c.l.b16 %v1522
    %v1815 = vunpack.c.l.b16 %v1523
    %v1816 = vunpack.c.l.b16 %v1524
    %v1817 = vunpack.c.l.b16 %v1525
    %v1818 = vunpack.c.l.b16 %v1526
    %v1819 = vunpack.c.l.b16 %v1527
    %v1820 = vunpack.c.l.b16 %v1528
    %v1821 = vunpack.c.l.b16 %v1529
    %v1822 = vunpack.c.l.b16 %v1530
    %v1823 = vunpack.c.l.b16 %v1531
    %v1824 = vunpack.c.l.b16 %v1532
    %v1825 = vunpack.c.l.b16 %v1533
    %v1826 = vunpack.c.l.b16 %v1534
    %v1827 = vunpack.c.l.b16 %v1535
    %v1828 = vunpack.c.l.b16 %v1536
    %v1829 = vunpack.c.l.b16 %v1537
    %v1830 = vunpack.c.l.b16 %v1538
    %v1831 = vunpack.c.l.b16 %v1539
    %v1832 = vunpack.c.l.b16 %v1540
    %v1833 = vunpack.c.l.b16 %v1541
    %v1834 = vunpack.c.l.b16 %v1542
    %v1835 = vunpack.c.l.b16 %v1543
    %v1836 = vunpack.c.l.b16 %v1544
    %v1837 = vunpack.c.l.b16 %v1545
    %v1838 = vunpack.c.l.b16 %v1546
    %v1839 = vunpack.c.l.b16 %v1547
    %v1840 = vunpack.c.l.b16 %v1548
    %v1841 = vunpack.c.l.b16 %v1549
    %v1842 = vunpack.c.l.b16 %v1550
    %v1843 = vunpack.c.l.b16 %v1551
    %v1844 = vunpack.c.l.b16 %v1552
    %v1845 = vunpack.c.l.b16 %v1553
    %v1846 = vunpack.c.l.b16 %v1554
    %v1847 = vunpack.c.l.b16 %v1555
    %v1848 = vunpack.c.l.b16 %v1556
    %v1849 = vunpack.c.l.b16 %v1557
    %v1850 = vunpack.c.l.b16 %v1558
    %v1851 = vunpack.c.l.b16 %v1559
    %v1852 = vunpack.c.l.b16 %v1560
    %v1853 = vunpack.c.l.b16 %v1561
    %v1854 = vunpack.c.l.b16 %v1562
    %v1855 = vunpack.c.l.b16 %v1563
    %v1856 = vunpack.c.l.b16 %v1564
    %v1857 = vunpack.c.l.b16 %v1565
    %v1858 = vunpack.c.l.b16 %v1566
    %v1859 = vunpack.c.l.b16 %v1567
    %v1860 = vunpack.c.l.b16 %v1568
    %v1861 = vunpack.c.l.b16 %v1569
    %v1862 = vunpack.c.l.b16 %v1570
    %v1863 = vunpack.c.l.b16 %v1571
    %v1864 = vunpack.c.l.b16 %v1572
    %v1865 = vunpack.c.l.b16 %v1573
    %v1866 = vunpack.c.l.b16 %v1574
    %v1867 = vunpack.c.l.b16 %v1575
    %v1868 = vunpack.c.l.b16 %v1576
    %v1869 = vunpack.c.l.b16 %v1577
    %v1870 = vunpack.c.l.b16 %v1578
    %v1871 = vunpack.c.l.b16 %v1579
    %v1872 = vunpack.c.l.b16 %v1580
    %v1873 = vunpack.c.l.b16 %v1581
    %v1874 = vunpack.c.l.b16 %v1582
    %v1875 = vunpack.c.l.b16 %v1583
    %v1876 = vunpack.c.l.b16 %v1584
    %v1877 = vunpack.c.l.b16 %v1585
    %v1878 = vunpack.c.l.b16 %v1586
    %v1879 = vunpack.c.l.b16 %v1587
    %v1880 = vunpack.c.l.b16 %v1588
    %v1881 = vunpack.c.l.b16 %v1589
    %v1882 = vunpack.c.l.b16 %v1590
    %v1883 = vunpack.c.l.b16 %v1591
    %v1884 = vunpack.c.l.b16 %v1592
    %v1885 = vunpack.c.l.b16 %v1593
    %v1886 = vunpack.c.l.b16 %v1594
    %v1887 = vunpack.c.l.b16 %v1595
    %v1888 = vunpack.c.l.b16 %v1596
    %v1889 = vunpack.c.l.b16 %v1597
    %v1890 = vunpack.c.l.b16 %v1598
    %v1891 = vunpack.c.l.b16 %v1599
    %v1892 = vunpack.c.l.b16 %v1600
    %v1893 = vunpack.c.l.b16 %v1601
    %v1894 = vunpack.c.l.b16 %v1602
    %v1895 = vunpack.c.l.b16 %v1603
    %v1896 = vunpack.c.l.b16 %v1604
    %v1897 = vunpack.c.l.b16 %v1605
    %v1898 = vunpack.c.l.b16 %v1606
    %v1899 = vunpack.c.l.b16 %v1607
    %v1900 = vunpack.c.l.b16 %v1608
    %v1901 = vunpack.c.l.b16 %v1609
    %v1902 = vunpack.c.l.b16 %v1610
    %v1903 = vunpack.c.l.b16 %v1611
    %v1904 = vunpack.c.l.b16 %v1612
    %v1905 = vunpack.c.l.b16 %v1613
    %v1906 = vunpack.c.l.b16 %v1614
    %v1907 = vunpack.c.l.b16 %v1615
    %v1908 = vunpack.c.l.b16 %v1616
    %v1909 = vunpack.c.l.b16 %v1617
    %v1910 = vunpack.c.l.b16 %v1618
    %v1911 = vunpack.c.l.b16 %v1619
    %v1912 = vunpack.c.l.b16 %v1620
    %v1913 = vunpack.c.l.b16 %v1621
    %v1914 = vunpack.c.l.b16 %v1622
    %v1915 = vunpack.c.l.b16 %v1623
    %v1916 = vunpack.c.l.b16 %v1624
    %v1917 = vunpack.c.l.b16 %v1625
    %v1918 = vunpack.c.l.b16 %v1626
    %v1919 = vunpack.c.l.b16 %v1627
    %v1920 = vunpack.c.l.b16 %v1628
    %v1921 = vunpack.c.l.b16 %v1629
    %v1922 = vpack.c.b16 %v1779, %v1778
    %v1923 = vpack.c.b16 %v1781, %v1780
    %v1924 = vpack.c.b16 %v1783, %v1782
    %v1925 = vpack.c.b16 %v1785, %v1784
    %v1926 = vpack.c.b16 %v1787, %v1786
    %v1927 = vpack.c.b16 %v1789, %v1788
    %v1928 = vpack.c.b16 %v1791, %v1790
    %v1929 = vpack.c.b16 %v1793, %v1792
    %v1930 = vpack.c.b16 %v1795, %v1794
    %v1931 = vpack.c.b16 %v1797, %v1796
    %v1932 = vpack.c.b16 %v1799, %v1798
    %v1933 = vpack.c.b16 %v1801, %v1800
    %v1934 = vpack.c.b16 %v1803, %v1802
    %v1935 = vpack.c.b16 %v1805, %v1804
    %v1936 = vpack.c.b16 %v1807, %v1806
    %v1937 = vpack.c.b16 %v1809, %v1808
    %v1938 = vpack.c.b16 %v1811, %v1810
    %v1939 = vpack.c.b16 %v1813, %v1812
    %v1940 = vpack.c.b16 %v1815, %v1814
    %v1941 = vpack.c.b16 %v1817, %v1816
    %v1942 = vpack.c.b16 %v1819, %v1818
    %v1943 = vpack.c.b16 %v1821, %v1820
    %v1944 = vpack.c.b16 %v1823, %v1822
    %v1945 = vpack.c.b16 %v1825, %v1824
    %v1946 = vpack.c.b16 %v1827, %v1826
    %v1947 = vpack.c.b16 %v1829, %v1828
    %v1948 = vpack.c.b16 %v1831, %v1830
    %v1949 = vpack.c.b16 %v1833, %v1832
    %v1950 = vpack.c.b16 %v1835, %v1834
    %v1951 = vpack.c.b16 %v1837, %v1836
    %v1952 = vpack.c.b16 %v1839, %v1838
    %v1953 = vpack.c.b16 %v1841, %v1840
    %v1954 = vpack.c.b16 %v1843, %v1842
    %v1955 = vpack.c.b16 %v1845, %v1844
    %v1956 = vpack.c.b16 %v1847, %v1846
    %v1957 = vpack.c.b16 %v1849, %v1848
    %v1958 = vpack.c.b16 %v1851, %v1850
    %v1959 = vpack.c.b16 %v1853, %v1852
    %v1960 = vpack.c.b16 %v1855, %v1854
    %v1961 = vpack.c.b16 %v1857, %v1856
    %v1962 = vpack.c.b16 %v1859, %v1858
    %v1963 = vpack.c.b16 %v1861, %v1860
    %v1964 = vpack.c.b16 %v1863, %v1862
    %v1965 = vpack.c.b16 %v1865, %v1864
    %v1966 = vpack.c.b16 %v1867, %v1866
    %v1967 = vpack.c.b16 %v1869, %v1868
    %v1968 = vpack.c.b16 %v1871, %v1870
    %v1969 = vpack.c.b16 %v1873, %v1872
    %v1970 = vpack.c.b16 %v1875, %v1874
    %v1971 = vpack.c.b16 %v1877, %v1876
    %v1972 = vpack.c.b16 %v1879, %v1878
    %v1973 = vpack.c.b16 %v1881, %v1880
    %v1974 = vpack.c.b16 %v1883, %v1882
    %v1975 = vpack.c.b16 %v1885, %v1884
    %v1976 = vpack.c.b16 %v1887, %v1886
    %v1977 = vpack.c.b16 %v1889, %v1888
    %v1978 = vpack.c.b16 %v1891, %v1890
    %v1979 = vpack.c.b16 %v1893, %v1892
    %v1980 = vpack.c.b16 %v1895, %v1894
    %v1981 = vpack.c.b16 %v1897, %v1896
    %v1982 = vpack.c.b16 %v1899, %v1898
    %v1983 = vpack.c.b16 %v1901, %v1900
    %v1984 = vpack.c.b16 %v1903, %v1902
    %v1985 = vpack.c.b16 %v1905, %v1904
    %v1986 = vpack.c.b16 %v1907, %v1906
    %v1987 = vpack.c.b16 %v1909, %v1908
    %v1988 = vpack.c.b16 %v1911, %v1910
    %v1989 = vpack.c.b16 %v1913, %v1912
    %v1990 = vpack.c.b16 %v1915, %v1914
    %v1991 = vpack.c.b16 %v1917, %v1916
    %v1992 = vpack.c.b16 %v1919, %v1918
    %v1993 = vpack.c.b16 %v1921, %v1920
    %2066 = vmatpush.bf16.msra.mxu0 %v1929
    %2067 = vmatpush.bf16.msra.mxu0 %v1928
    %2068 = vmatpush.bf16.msra.mxu0 %v1927
    %2069 = vmatpush.bf16.msra.mxu0 %v1926
    %2070 = vmatpush.bf16.msra.mxu0 %v1925
    %2071 = vmatpush.bf16.msra.mxu0 %v1924
    %2072 = vmatpush.bf16.msra.mxu0 %v1923
    %2073 = vmatpush.bf16.msra.mxu0 %v1922
    %2074 = vmatmul.bf16.gmra.mxu0 %v1477
    %v2075 = vpop.f32.mrf.mxu0
    %v2076 = vadd.f32 %v1632, %v2075
    %v2077 = vpop.f32.mrf.mxu0
    %2078 = vdwg.mxu0
    %2079 = vmatpush.bf16.msra.mxu0 %v1937
    %2080 = vmatpush.bf16.msra.mxu0 %v1936
    %2081 = vmatpush.bf16.msra.mxu0 %v1935
    %2082 = vmatpush.bf16.msra.mxu0 %v1934
    %2083 = vmatpush.bf16.msra.mxu0 %v1933
    %2084 = vmatpush.bf16.msra.mxu0 %v1932
    %2085 = vmatpush.bf16.msra.mxu0 %v1931
    %2086 = vmatpush.bf16.msra.mxu0 %v1930
    %2087 = vmatmul.bf16.gmra.mxu0 %v1478
    %v2088 = vpop.f32.mrf.mxu0
    %v2089 = vadd.f32 %v2076, %v2088
    %v2090 = vpop.f32.mrf.mxu0
    %2091 = vdwg.mxu0
    %2092 = vmatpush.bf16.msra.mxu0 %v1945
    %2093 = vmatpush.bf16.msra.mxu0 %v1944
    %2094 = vmatpush.bf16.msra.mxu0 %v1943
    %2095 = vmatpush.bf16.msra.mxu0 %v1942
    %2096 = vmatpush.bf16.msra.mxu0 %v1941
    %2097 = vmatpush.bf16.msra.mxu0 %v1940
    %2098 = vmatpush.bf16.msra.mxu0 %v1939
    %2099 = vmatpush.bf16.msra.mxu0 %v1938
    %2100 = vmatmul.bf16.gmra.mxu0 %v1479
    %v2101 = vpop.f32.mrf.mxu0
    %v2102 = vadd.f32 %v2089, %v2101
    %v2103 = vpop.f32.mrf.mxu0
    %2104 = vdwg.mxu0
    %2105 = vmatpush.bf16.msra.mxu0 %v1953
    %2106 = vmatpush.bf16.msra.mxu0 %v1952
    %2107 = vmatpush.bf16.msra.mxu0 %v1951
    %2108 = vmatpush.bf16.msra.mxu0 %v1950
    %2109 = vmatpush.bf16.msra.mxu0 %v1949
    %2110 = vmatpush.bf16.msra.mxu0 %v1948
    %2111 = vmatpush.bf16.msra.mxu0 %v1947
    %2112 = vmatpush.bf16.msra.mxu0 %v1946
    %2113 = vmatmul.bf16.gmra.mxu0 %v1480
    %v2114 = vpop.f32.mrf.mxu0
    %v2115 = vadd.f32 %v2102, %v2114
    %v2116 = vpop.f32.mrf.mxu0
    %2117 = vdwg.mxu0
    %2118 = vmatpush.bf16.msra.mxu0 %v1961
    %2119 = vmatpush.bf16.msra.mxu0 %v1960
    %2120 = vmatpush.bf16.msra.mxu0 %v1959
    %2121 = vmatpush.bf16.msra.mxu0 %v1958
    %2122 = vmatpush.bf16.msra.mxu0 %v1957
    %2123 = vmatpush.bf16.msra.mxu0 %v1956
    %2124 = vmatpush.bf16.msra.mxu0 %v1955
    %2125 = vmatpush.bf16.msra.mxu0 %v1954
    %2126 = vmatmul.bf16.gmra.mxu0 %v1481
    %v2127 = vpop.f32.mrf.mxu0
    %v2128 = vadd.f32 %v2115, %v2127
    %v2129 = vpop.f32.mrf.mxu0
    %2130 = vdwg.mxu0
    %2131 = vmatpush.bf16.msra.mxu0 %v1969
    %2132 = vmatpush.bf16.msra.mxu0 %v1968
    %2133 = vmatpush.bf16.msra.mxu0 %v1967
    %2134 = vmatpush.bf16.msra.mxu0 %v1966
    %2135 = vmatpush.bf16.msra.mxu0 %v1965
    %2136 = vmatpush.bf16.msra.mxu0 %v1964
    %2137 = vmatpush.bf16.msra.mxu0 %v1963
    %2138 = vmatpush.bf16.msra.mxu0 %v1962
    %2139 = vmatmul.bf16.gmra.mxu0 %v1482
    %v2140 = vpop.f32.mrf.mxu0
    %v2141 = vadd.f32 %v2128, %v2140
    %v2142 = vpop.f32.mrf.mxu0
    %2143 = vdwg.mxu0
    %2144 = vmatpush.bf16.msra.mxu0 %v1977
    %2145 = vmatpush.bf16.msra.mxu0 %v1976
    %2146 = vmatpush.bf16.msra.mxu0 %v1975
    %2147 = vmatpush.bf16.msra.mxu0 %v1974
    %2148 = vmatpush.bf16.msra.mxu0 %v1973
    %2149 = vmatpush.bf16.msra.mxu0 %v1972
    %2150 = vmatpush.bf16.msra.mxu0 %v1971
    %2151 = vmatpush.bf16.msra.mxu0 %v1970
    %2152 = vmatmul.bf16.gmra.mxu0 %v1483
    %v2153 = vpop.f32.mrf.mxu0
    %v2154 = vadd.f32 %v2141, %v2153
    %v2155 = vpop.f32.mrf.mxu0
    %2156 = vdwg.mxu0
    %2157 = vmatpush.bf16.msra.mxu0 %v1985
    %2158 = vmatpush.bf16.msra.mxu0 %v1984
    %2159 = vmatpush.bf16.msra.mxu0 %v1983
    %2160 = vmatpush.bf16.msra.mxu0 %v1982
    %2161 = vmatpush.bf16.msra.mxu0 %v1981
    %2162 = vmatpush.bf16.msra.mxu0 %v1980
    %2163 = vmatpush.bf16.msra.mxu0 %v1979
    %2164 = vmatpush.bf16.msra.mxu0 %v1978
    %2165 = vmatmul.bf16.gmra.mxu0 %v1484
    %v2166 = vpop.f32.mrf.mxu0
    %v2167 = vadd.f32 %v2154, %v2166
    %v2168 = vpop.f32.mrf.mxu0
    %2169 = vdwg.mxu0
    %2170 = vmatpush.bf16.msra.mxu0 %v1993
    %2171 = vmatpush.bf16.msra.mxu0 %v1992
    %2172 = vmatpush.bf16.msra.mxu0 %v1991
    %2173 = vmatpush.bf16.msra.mxu0 %v1990
    %2174 = vmatpush.bf16.msra.mxu0 %v1989
    %2175 = vmatpush.bf16.msra.mxu0 %v1988
    %2176 = vmatpush.bf16.msra.mxu0 %v1987
    %2177 = vmatpush.bf16.msra.mxu0 %v1986
    %2178 = vmatmul.bf16.gmra.mxu0 %v1485
    %v2179 = vpop.f32.mrf.mxu0
    %v2180 = vadd.f32 %v2167, %v2179
    %v2181 = vpop.f32.mrf.mxu0
    %2182 = vdwg.mxu0
    %v2183 = vmax.f32 %v2180, 0.0
    %vm2184 = vcmask 140288
    %2185 = vst.msk [vmem:[#allocation2] sm:$0x3] %vm2184, %v2183
    %2187 = vrot.lane.b32.xlu0 %v2180, 110
    %v2188 = vpop.permute.xlu0 %2187
    %vm2190 = vcmask 1024
    %2191 = vst.msk [vmem:[%s9] sm:$0x3] %vm2190, %v2188
    // Predicated region
    $region34: #{prediction_forward.1} parent=1 // pred_check
      _
    $region35: #{prediction_forward.1} parent=1 // pred_check_branch
      %2193 = sbr.rel (0) target = $region37
    $region36: #{prediction_forward.1} parent=1 // pred_region
      %2195 = vsyncadd [#allocation3], 0
      %s2197 = sshll.u32 [#allocation2], 4
      %s2198 = int_to_ptr.vmem [resolvable:$true] %s2197
      %s2199 = sshll.u32 %s8, 4
      %s2200 = int_to_ptr.hbm [resolvable:$true] %s2199
      %2202 = dma.vmem_to_hbm [thread:$0]  %s2198, 32, %s2200, [#allocation3]
    $region37: #{prediction_forward.1} parent=1 // pred_fallthru
      _
    // Predicated region
    $region38: #{prediction_forward.1} parent=1 // pred_check
      _
    $region39: #{prediction_forward.1} parent=1 // pred_check_branch
      %2204 = sbr.rel (0) target = $region41
    $region40: #{prediction_forward.1} parent=1 // pred_region
      _
    $region41: #{prediction_forward.1} parent=1 // pred_fallthru
      _
    // Predicated region
    $region42: #{prediction_forward.1} parent=1 // pred_check
      _
    $region43: #{prediction_forward.1} parent=1 // pred_check_branch
      %2206 = sbr.rel (0) target = $region45
    $region44: #{prediction_forward.1} parent=1 // pred_region
      %2208 = dma.done [#allocation3], 32
    $region45: #{prediction_forward.1} parent=1 // pred_fallthru
      _
    // Predicated region
    $region46: #{prediction_forward.1} parent=1 // pred_check
      _
    $region47: #{prediction_forward.1} parent=1 // pred_check_branch
      %2210 = sbr.rel (0) target = $region49
    $region48: #{prediction_forward.1} parent=1 // pred_region
      _
    $region49: #{prediction_forward.1} parent=1 // pred_fallthru
      _
    %2211 = vsyncpa [#allocation3], 1

</llo_original>
